<compile_context>
chip_gen: v7x
topology: tpu7x:2x2x1
jax: 0.10.0
libtpu: 0.0.40
codegen_flags: <defaults>
</compile_context>

<pallas_src>
import jax
import jax.numpy as jnp
import numpy as np
from jax import lax
from jax.experimental import pallas as pl
from jax.experimental.pallas import tpu as pltpu


def classifier_kernel(g_ref, m_ref,
                      w1g_ref, w1m_ref, b1_ref,
                      wih_g_ref, wih_m_ref, wih_ma_ref, wih_a_ref, whh_ref,
                      bg_ref,
                      w2g_ref, w2m_ref, b2_ref,
                      logp1_ref, logp2_ref):
    B, L, H4 = g_ref.shape          # H4 = 4 * hidden (G feature width)
    H = m_ref.shape[2]              # hidden
    bf16 = jnp.bfloat16

    G = g_ref[...]                  # (B, L, 4H) f32
    M = m_ref[...]                  # (B, L, H)  f32

    # ---- both G-side score reductions in one pass over G -------------------
    s1_g = jnp.sum(G * w1g_ref[0], axis=-1)                    # (B, L)
    s2_g = jnp.sum(G * w2g_ref[0], axis=-1)                    # (B, L) (post-LSTM)

    # ---- y_scores1 = [G, M] @ w1 + b1  (Linear(5H, 1)) ----------------------
    s1 = s1_g + jnp.sum(M * w1m_ref[0], axis=-1) + b1_ref[0]   # (B, L)

    # ---- softmax / log_softmax over context dim L (lanes) -------------------
    mx = jnp.max(s1, axis=-1, keepdims=True)
    e = jnp.exp(s1 - mx)
    se = jnp.sum(e, axis=-1, keepdims=True)
    logp1_ref[...] = (s1 - mx - jnp.log(se))[:, None, :]       # (B, 1, L)
    p1 = e / se                                                # (B, L)

    # ---- attention A[b] = p1[b] @ M[b] as a single VPU/XLU reduction --------
    A = jnp.sum(p1[:, :, None] * M, axis=1)                    # (B, H)
    MA = M * A[:, None, :]                                     # (B, L, H)

    # ---- LSTM input-gate precompute: G2 @ W_ih^T + (b_ih + b_hh) ------------
    # G2 = [G, M, A, M*A]; the A term is constant over L -> fold into bias.
    # bf16 MXU operands, f32 accumulation.  No [M, MA] concat: two dots summed.
    Gf = G.reshape(B * L, H4).astype(bf16)
    Mf = M.reshape(B * L, H).astype(bf16)
    MAf = MA.reshape(B * L, H).astype(bf16)
    xg_flat = (jnp.dot(Gf, wih_g_ref[...], preferred_element_type=jnp.float32)
               + jnp.dot(Mf, wih_m_ref[...], preferred_element_type=jnp.float32)
               + jnp.dot(MAf, wih_ma_ref[...], preferred_element_type=jnp.float32))
    a_bias = (jnp.dot(A.astype(bf16), wih_a_ref[...],
                      preferred_element_type=jnp.float32) + bg_ref[...])   # (B, 4H)
    xg = xg_flat.reshape(B, L, H4) + a_bias[:, None, :]                    # (B, L, 4H)
    # hoist per-step time slices off the recurrence chain
    xs = [xg[:, t, :] for t in range(L)]                                   # L x (B, 4H)

    # ---- batched LSTM recurrence over time, state carried in vregs ----------
    # Gate columns were permuted host-side to [i, f, o, g]: sigmoid on 3H lanes,
    # tanh on H lanes per step.
    whh = whh_ref[...]                                        # (H, 4H) bf16
    w2m = w2m_ref[0]                                          # (H,)    f32
    lane_ids = lax.broadcasted_iota(jnp.int32, (B, L), 1)
    h = jnp.zeros((B, H), jnp.float32)
    c = jnp.zeros((B, H), jnp.float32)
    s2m = jnp.zeros((B, L), jnp.float32)
    # TODO(synk): for long contexts (L >> 8) switch to lax.fori_loop(unroll=4-8)
    # carrying (h, c, s2m) to bound vreg liveness; full unroll is best at L=8.
    for t in range(L):
        gates = xs[t] + jnp.dot(h.astype(bf16), whh,
                                preferred_element_type=jnp.float32)        # (B, 4H)
        sig = jax.nn.sigmoid(gates[:, :3 * H])                # [i | f | o]
        g_g = jnp.tanh(gates[:, 3 * H:])                      # g
        i_g = sig[:, 0:H]
        f_g = sig[:, H:2 * H]
        o_g = sig[:, 2 * H:3 * H]
        c = f_g * c + i_g * g_g
        h = o_g * jnp.tanh(c)
        # fold this step's w2 contribution into (B, L); M2 is never materialized
        s2m_t = jnp.sum(h * w2m, axis=-1, keepdims=True)      # (B, 1)
        s2m = s2m + jnp.where(lane_ids == t, s2m_t, 0.0)

    # ---- y_scores2 = [G, M2] @ w2 + b2, then log_softmax over L -------------
    s2 = s2_g + s2m + b2_ref[0]                               # (B, L)
    mx2 = jnp.max(s2, axis=-1, keepdims=True)
    e2 = jnp.exp(s2 - mx2)
    se2 = jnp.sum(e2, axis=-1, keepdims=True)
    logp2_ref[...] = (s2 - mx2 - jnp.log(se2))[:, None, :]    # (B, 1, L)


def _permute_gates(w, H):
    """Permute last-axis gate blocks from PyTorch [i|f|g|o] to [i|f|o|g]."""
    return jnp.concatenate(
        [w[..., :2 * H], w[..., 3 * H:4 * H], w[..., 2 * H:3 * H]], axis=-1)


def classifier_forward(G, M, params, *, batch_parallel=False):
    """G: (B, L, 4H), M: (B, L, H) -> (log_p1, log_p2), each (B, L).

    batch_parallel=True runs a grid over the batch with "parallel" semantics so
    the independent per-example chains shard across TensorCores (multi-TC chips,
    e.g. v7x).  The default grid-less fused call is best on 1-TC chips.
    """
    B, L, _ = G.shape
    H = M.shape[-1]
    H4 = 4 * H
    bf16 = jnp.bfloat16

    # Host-side weight prep: gate permutation, W_ih^T split by G2 = [G|M|A|M*A]
    # row-blocks (A-term folds into the gate bias in-kernel), bf16 MXU operands.
    wihT = _permute_gates(params['wihT'], H)                 # (7H, 4H)
    whh = _permute_gates(params['whhT'], H).astype(bf16)     # (H, 4H)
    bgate = _permute_gates(params['bgate'], H)               # (1, 4H) f32
    wih_g = wihT[0:H4, :].astype(bf16)                       # (4H, 4H)
    wih_m = wihT[H4:H4 + H, :].astype(bf16)                  # (H, 4H)
    wih_a = wihT[H4 + H:H4 + 2 * H, :].astype(bf16)          # (H, 4H)
    wih_ma = wihT[H4 + 2 * H:H4 + 3 * H, :].astype(bf16)     # (H, 4H)

    vmem = pl.BlockSpec(memory_space=pltpu.MemorySpace.VMEM)
    smem = pl.BlockSpec(memory_space=pltpu.MemorySpace.SMEM)

    out_shape = (jax.ShapeDtypeStruct((B, 1, L), jnp.float32),
                 jax.ShapeDtypeStruct((B, 1, L), jnp.float32))

    if batch_parallel:
        in_specs = [pl.BlockSpec((1, L, H4), lambda b: (b, 0, 0)),   # G
                    pl.BlockSpec((1, L, H), lambda b: (b, 0, 0)),    # M
                    vmem, vmem, smem,                                # w1g, w1m, b1
                    vmem, vmem, vmem, vmem, vmem, vmem,              # LSTM weights
                    vmem, vmem, smem]                                # w2g, w2m, b2
        out_specs = (pl.BlockSpec((1, 1, L), lambda b: (b, 0, 0)),
                     pl.BlockSpec((1, 1, L), lambda b: (b, 0, 0)))
        call = pl.pallas_call(
            classifier_kernel, out_shape=out_shape, grid=(B,),
            in_specs=in_specs, out_specs=out_specs,
            compiler_params=pltpu.CompilerParams(
                dimension_semantics=("parallel",)))
    else:
        in_specs = [vmem, vmem,
                    vmem, vmem, smem,
                    vmem, vmem, vmem, vmem, vmem, vmem,
                    vmem, vmem, smem]
        out_specs = (vmem, vmem)
        call = pl.pallas_call(classifier_kernel, out_shape=out_shape,
                              in_specs=in_specs, out_specs=out_specs)

    logp1, logp2 = call(G, M,
                        params['w1g'], params['w1m'], params['b1'],
                        wih_g, wih_m, wih_ma, wih_a, whh, bgate,
                        params['w2g'], params['w2m'], params['b2'])
    return logp1.reshape(B, L), logp2.reshape(B, L)


def reference_forward(G, M, params):
    """Pure-JAX f32 reference mirroring the PyTorch forward (eval mode)."""
    B, L, _ = G.shape
    H = M.shape[-1]
    w1 = jnp.concatenate([params['w1g'][0], params['w1m'][0]])
    s1 = jnp.einsum('bld,d->bl', jnp.concatenate([G, M], -1), w1) + params['b1'][0]
    logp1 = jax.nn.log_softmax(s1, axis=1)
    p1 = jax.nn.softmax(s1, axis=1)
    A = jnp.einsum('bl,blh->bh', p1, M)[:, None, :]
    A = jnp.broadcast_to(A, (B, L, H))
    G2 = jnp.concatenate([G, M, A, M * A], axis=-1)
    xg = jnp.einsum('bld,dk->blk', G2, params['wihT']) + params['bgate']

    def cell(carry, x_t):
        h, c = carry
        gates = x_t + h @ params['whhT']
        i = jax.nn.sigmoid(gates[:, 0:H])
        f = jax.nn.sigmoid(gates[:, H:2 * H])
        g = jnp.tanh(gates[:, 2 * H:3 * H])
        o = jax.nn.sigmoid(gates[:, 3 * H:4 * H])
        c = f * c + i * g
        h = o * jnp.tanh(c)
        return (h, c), h

    h0 = jnp.zeros((B, H), jnp.float32)
    c0 = jnp.zeros((B, H), jnp.float32)
    _, hs = lax.scan(cell, (h0, c0), jnp.swapaxes(xg, 0, 1))
    M2 = jnp.swapaxes(hs, 0, 1)
    w2 = jnp.concatenate([params['w2g'][0], params['w2m'][0]])
    s2 = jnp.einsum('bld,d->bl', jnp.concatenate([G, M2], -1), w2) + params['b2'][0]
    logp2 = jax.nn.log_softmax(s2, axis=1)
    return logp1, logp2


if __name__ == "__main__":
    # small shapes consistent with the module: batch_l=2, context_l=8, hidden=32
    B, L, H = 2, 8, 32
    key = jax.random.PRNGKey(0)
    k = jax.random.split(key, 12)
    sc = 0.08

    G = jax.random.normal(k[0], (B, L, 4 * H), jnp.float32)
    M = jax.random.normal(k[1], (B, L, H), jnp.float32)

    # deterministic synthetic parameters (nn.Linear(5H,1) x2 and
    # nn.LSTM(input=7H, hidden=H, 1 layer, unidirectional))
    params = dict(
        w1g=jax.random.normal(k[2], (1, 4 * H), jnp.float32) * sc,
        w1m=jax.random.normal(k[3], (1, H), jnp.float32) * sc,
        b1=jax.random.normal(k[4], (1,), jnp.float32) * sc,
        wihT=jax.random.normal(k[5], (7 * H, 4 * H), jnp.float32) * sc,  # W_ih^T
        whhT=jax.random.normal(k[6], (H, 4 * H), jnp.float32) * sc,      # W_hh^T
        bgate=jax.random.normal(k[7], (1, 4 * H), jnp.float32) * sc,     # b_ih + b_hh
        w2g=jax.random.normal(k[8], (1, 4 * H), jnp.float32) * sc,
        w2m=jax.random.normal(k[9], (1, H), jnp.float32) * sc,
        b2=jax.random.normal(k[10], (1,), jnp.float32) * sc,
    )

    r1, r2 = reference_forward(G, M, params)

    # fused, grid-less call (best on single-TensorCore chips: v5e / v6e)
    logp1, logp2 = classifier_forward(G, M, params)
    jax.block_until_ready((logp1, logp2))
    assert logp1.shape == (B, L) and logp2.shape == (B, L)
    np.testing.assert_allclose(np.asarray(logp1), np.asarray(r1), atol=5e-3, rtol=5e-3)
    # logp2 path uses bf16 MXU operands through the LSTM recurrence (f32 accum),
    # so its tolerance is slightly looser than the pure-f32 logp1 path.
    np.testing.assert_allclose(np.asarray(logp2), np.asarray(r2), atol=2e-2, rtol=2e-2)

    # batch-parallel variant: grid over B with "parallel" semantics (shards the
    # independent per-example chains across TensorCores on v7x-like chips)
    logp1p, logp2p = classifier_forward(G, M, params, batch_parallel=True)
    jax.block_until_ready((logp1p, logp2p))
    np.testing.assert_allclose(np.asarray(logp1p), np.asarray(r1), atol=5e-3, rtol=5e-3)
    np.testing.assert_allclose(np.asarray(logp2p), np.asarray(r2), atol=2e-2, rtol=2e-2)

    print("KERNEL_OK")
</pallas_src>

<mosaic_0001>
module attributes {stable_mosaic.version = 11 : i64} {
  func.func @classifier_kernel(%arg0: memref<2x8x128xf32, #tpu.memory_space<vmem>>, %arg1: memref<2x8x32xf32, #tpu.memory_space<vmem>>, %arg2: memref<1x128xf32, #tpu.memory_space<vmem>>, %arg3: memref<1x32xf32, #tpu.memory_space<vmem>>, %arg4: memref<1xf32, #tpu.memory_space<smem>>, %arg5: memref<128x128xbf16, #tpu.memory_space<vmem>>, %arg6: memref<32x128xbf16, #tpu.memory_space<vmem>>, %arg7: memref<32x128xbf16, #tpu.memory_space<vmem>>, %arg8: memref<32x128xbf16, #tpu.memory_space<vmem>>, %arg9: memref<32x128xbf16, #tpu.memory_space<vmem>>, %arg10: memref<1x128xf32, #tpu.memory_space<vmem>>, %arg11: memref<1x128xf32, #tpu.memory_space<vmem>>, %arg12: memref<1x32xf32, #tpu.memory_space<vmem>>, %arg13: memref<1xf32, #tpu.memory_space<smem>>, %arg14: memref<2x1x8xf32, #tpu.memory_space<vmem>>, %arg15: memref<2x1x8xf32, #tpu.memory_space<vmem>>) attributes {dimension_semantics = [], scalar_prefetch = 0 : i64, scratch_operands = 0 : i64, tpu.core_type = #tpu.core_type<tc>} {
    %c0 = arith.constant 0 : index
    %c0_0 = arith.constant 0 : index
    %c0_1 = arith.constant 0 : index
    %0 = vector.load %arg0[%c0, %c0_0, %c0_1] : memref<2x8x128xf32, #tpu.memory_space<vmem>>, vector<2x8x128xf32>
    %c0_2 = arith.constant 0 : index
    %c0_3 = arith.constant 0 : index
    %c0_4 = arith.constant 0 : index
    %1 = vector.load %arg1[%c0_2, %c0_3, %c0_4] : memref<2x8x32xf32, #tpu.memory_space<vmem>>, vector<2x8x32xf32>
    %c0_5 = arith.constant 0 : index
    %c0_6 = arith.constant 0 : index
    %2 = vector.load %arg2[%c0_5, %c0_6] : memref<1x128xf32, #tpu.memory_space<vmem>>, vector<1x128xf32>
    %3 = vector.shape_cast %2 : vector<1x128xf32> to vector<128xf32>
    %4 = vector.shape_cast %3 : vector<128xf32> to vector<1x1x128xf32>
    %5 = vector.broadcast %4 : vector<1x1x128xf32> to vector<2x8x128xf32>
    %6 = arith.mulf %0, %5 : vector<2x8x128xf32>
    %cst = arith.constant dense<0.000000e+00> : vector<2x8xf32>
    %7 = vector.multi_reduction <add>, %6, %cst [2] : vector<2x8x128xf32> to vector<2x8xf32>
    %c0_7 = arith.constant 0 : index
    %c0_8 = arith.constant 0 : index
    %8 = vector.load %arg11[%c0_7, %c0_8] : memref<1x128xf32, #tpu.memory_space<vmem>>, vector<1x128xf32>
    %9 = vector.shape_cast %8 : vector<1x128xf32> to vector<128xf32>
    %10 = vector.shape_cast %9 : vector<128xf32> to vector<1x1x128xf32>
    %11 = vector.broadcast %10 : vector<1x1x128xf32> to vector<2x8x128xf32>
    %12 = arith.mulf %0, %11 : vector<2x8x128xf32>
    %cst_9 = arith.constant dense<0.000000e+00> : vector<2x8xf32>
    %13 = vector.multi_reduction <add>, %12, %cst_9 [2] : vector<2x8x128xf32> to vector<2x8xf32>
    %c0_10 = arith.constant 0 : index
    %c0_11 = arith.constant 0 : index
    %14 = vector.load %arg3[%c0_10, %c0_11] : memref<1x32xf32, #tpu.memory_space<vmem>>, vector<1x32xf32>
    %15 = vector.shape_cast %14 : vector<1x32xf32> to vector<32xf32>
    %16 = vector.shape_cast %15 : vector<32xf32> to vector<1x1x32xf32>
    %17 = vector.broadcast %16 : vector<1x1x32xf32> to vector<2x8x32xf32>
    %18 = arith.mulf %1, %17 : vector<2x8x32xf32>
    %cst_12 = arith.constant dense<0.000000e+00> : vector<2x8xf32>
    %19 = vector.multi_reduction <add>, %18, %cst_12 [2] : vector<2x8x32xf32> to vector<2x8xf32>
    %20 = arith.addf %7, %19 : vector<2x8xf32>
    %c0_13 = arith.constant 0 : index
    %21 = memref.load %arg4[%c0_13] : memref<1xf32, #tpu.memory_space<smem>>
    %22 = vector.broadcast %21 : f32 to vector<2x8xf32>
    %23 = arith.addf %20, %22 : vector<2x8xf32>
    %cst_14 = arith.constant dense<0xFF800000> : vector<2xf32>
    %24 = vector.multi_reduction <maximumf>, %23, %cst_14 [1] : vector<2x8xf32> to vector<2xf32>
    %25 = vector.shape_cast %24 : vector<2xf32> to vector<2x1xf32>
    %26 = vector.broadcast %25 : vector<2x1xf32> to vector<2x8xf32>
    %27 = arith.subf %23, %26 : vector<2x8xf32>
    %28 = math.exp %27 : vector<2x8xf32>
    %cst_15 = arith.constant dense<0.000000e+00> : vector<2xf32>
    %29 = vector.multi_reduction <add>, %28, %cst_15 [1] : vector<2x8xf32> to vector<2xf32>
    %30 = vector.shape_cast %29 : vector<2xf32> to vector<2x1xf32>
    %31 = vector.broadcast %25 : vector<2x1xf32> to vector<2x8xf32>
    %32 = arith.subf %23, %31 : vector<2x8xf32>
    %33 = math.log %30 : vector<2x1xf32>
    %34 = vector.broadcast %33 : vector<2x1xf32> to vector<2x8xf32>
    %35 = arith.subf %32, %34 : vector<2x8xf32>
    %36 = vector.shape_cast %35 : vector<2x8xf32> to vector<2x1x8xf32>
    %c0_16 = arith.constant 0 : index
    %c0_17 = arith.constant 0 : index
    %c0_18 = arith.constant 0 : index
    %37 = vector.load %arg14[%c0_16, %c0_17, %c0_18] : memref<2x1x8xf32, #tpu.memory_space<vmem>>, vector<2x1x8xf32>
    tpu.vector_store %arg14[%c0_16, %c0_17, %c0_18], %36 {strides = array<i32>} : memref<2x1x8xf32, #tpu.memory_space<vmem>>, vector<2x1x8xf32>,
    %38 = vector.broadcast %30 : vector<2x1xf32> to vector<2x8xf32>
    %39 = arith.divf %28, %38 : vector<2x8xf32>
    %40 = vector.shape_cast %39 : vector<2x8xf32> to vector<2x8x1xf32>
    %41 = vector.broadcast %40 : vector<2x8x1xf32> to vector<2x8x32xf32>
    %42 = arith.mulf %41, %1 : vector<2x8x32xf32>
    %cst_19 = arith.constant dense<0.000000e+00> : vector<2x32xf32>
    %43 = vector.multi_reduction <add>, %42, %cst_19 [1] : vector<2x8x32xf32> to vector<2x32xf32>
    %44 = vector.shape_cast %43 : vector<2x32xf32> to vector<2x1x32xf32>
    %45 = vector.broadcast %44 : vector<2x1x32xf32> to vector<2x8x32xf32>
    %46 = arith.mulf %1, %45 : vector<2x8x32xf32>
    %47 = vector.shape_cast %0 : vector<2x8x128xf32> to vector<16x128xf32>
    %48 = arith.truncf %47 : vector<16x128xf32> to vector<16x128xbf16>
    %49 = vector.shape_cast %1 : vector<2x8x32xf32> to vector<16x32xf32>
    %50 = arith.truncf %49 : vector<16x32xf32> to vector<16x32xbf16>
    %51 = vector.shape_cast %46 : vector<2x8x32xf32> to vector<16x32xf32>
    %52 = arith.truncf %51 : vector<16x32xf32> to vector<16x32xbf16>
    %c0_20 = arith.constant 0 : index
    %c0_21 = arith.constant 0 : index
    %53 = vector.load %arg5[%c0_20, %c0_21] : memref<128x128xbf16, #tpu.memory_space<vmem>>, vector<128x128xbf16>
    %cst_22 = arith.constant dense<0.000000e+00> : vector<16x128xf32>
    %54 = tpu.matmul %48, %53, %cst_22 {dimension_numbers = #tpu.dot_dimension_numbers<[1], [0], [0], [1], [0, 0, 1, 1], [], []>} : vector<16x128xbf16>, vector<128x128xbf16>, vector<16x128xf32> -> vector<16x128xf32>
    %c0_23 = arith.constant 0 : index
    %c0_24 = arith.constant 0 : index
    %55 = vector.load %arg6[%c0_23, %c0_24] : memref<32x128xbf16, #tpu.memory_space<vmem>>, vector<32x128xbf16>
    %cst_25 = arith.constant dense<0.000000e+00> : vector<16x128xf32>
    %56 = tpu.matmul %50, %55, %cst_25 {dimension_numbers = #tpu.dot_dimension_numbers<[1], [0], [0], [1], [0, 0, 1, 1], [], []>} : vector<16x32xbf16>, vector<32x128xbf16>, vector<16x128xf32> -> vector<16x128xf32>
    %57 = arith.addf %54, %56 : vector<16x128xf32>
    %c0_26 = arith.constant 0 : index
    %c0_27 = arith.constant 0 : index
    %58 = vector.load %arg7[%c0_26, %c0_27] : memref<32x128xbf16, #tpu.memory_space<vmem>>, vector<32x128xbf16>
    %cst_28 = arith.constant dense<0.000000e+00> : vector<16x128xf32>
    %59 = tpu.matmul %52, %58, %cst_28 {dimension_numbers = #tpu.dot_dimension_numbers<[1], [0], [0], [1], [0, 0, 1, 1], [], []>} : vector<16x32xbf16>, vector<32x128xbf16>, vector<16x128xf32> -> vector<16x128xf32>
    %60 = arith.addf %57, %59 : vector<16x128xf32>
    %61 = arith.truncf %43 : vector<2x32xf32> to vector<2x32xbf16>
    %c0_29 = arith.constant 0 : index
    %c0_30 = arith.constant 0 : index
    %62 = vector.load %arg8[%c0_29, %c0_30] : memref<32x128xbf16, #tpu.memory_space<vmem>>, vector<32x128xbf16>
    %cst_31 = arith.constant dense<0.000000e+00> : vector<2x128xf32>
    %63 = tpu.matmul %61, %62, %cst_31 {dimension_numbers = #tpu.dot_dimension_numbers<[1], [0], [0], [1], [0, 0, 1, 1], [], []>} : vector<2x32xbf16>, vector<32x128xbf16>, vector<2x128xf32> -> vector<2x128xf32>
    %c0_32 = arith.constant 0 : index
    %c0_33 = arith.constant 0 : index
    %64 = vector.load %arg10[%c0_32, %c0_33] : memref<1x128xf32, #tpu.memory_space<vmem>>, vector<1x128xf32>
    %65 = vector.broadcast %64 : vector<1x128xf32> to vector<2x128xf32>
    %66 = arith.addf %63, %65 : vector<2x128xf32>
    %67 = vector.shape_cast %60 : vector<16x128xf32> to vector<2x8x128xf32>
    %68 = vector.shape_cast %66 : vector<2x128xf32> to vector<2x1x128xf32>
    %69 = vector.broadcast %68 : vector<2x1x128xf32> to vector<2x8x128xf32>
    %70 = arith.addf %67, %69 : vector<2x8x128xf32>
    %71 = vector.extract_strided_slice %70 {offsets = [0, 0, 0], sizes = [2, 1, 128], strides = [1, 1, 1]} : vector<2x8x128xf32> to vector<2x1x128xf32>
    %72 = vector.shape_cast %71 : vector<2x1x128xf32> to vector<2x128xf32>
    %73 = vector.extract_strided_slice %70 {offsets = [0, 1, 0], sizes = [2, 1, 128], strides = [1, 1, 1]} : vector<2x8x128xf32> to vector<2x1x128xf32>
    %74 = vector.shape_cast %73 : vector<2x1x128xf32> to vector<2x128xf32>
    %75 = vector.extract_strided_slice %70 {offsets = [0, 2, 0], sizes = [2, 1, 128], strides = [1, 1, 1]} : vector<2x8x128xf32> to vector<2x1x128xf32>
    %76 = vector.shape_cast %75 : vector<2x1x128xf32> to vector<2x128xf32>
    %77 = vector.extract_strided_slice %70 {offsets = [0, 3, 0], sizes = [2, 1, 128], strides = [1, 1, 1]} : vector<2x8x128xf32> to vector<2x1x128xf32>
    %78 = vector.shape_cast %77 : vector<2x1x128xf32> to vector<2x128xf32>
    %79 = vector.extract_strided_slice %70 {offsets = [0, 4, 0], sizes = [2, 1, 128], strides = [1, 1, 1]} : vector<2x8x128xf32> to vector<2x1x128xf32>
    %80 = vector.shape_cast %79 : vector<2x1x128xf32> to vector<2x128xf32>
    %81 = vector.extract_strided_slice %70 {offsets = [0, 5, 0], sizes = [2, 1, 128], strides = [1, 1, 1]} : vector<2x8x128xf32> to vector<2x1x128xf32>
    %82 = vector.shape_cast %81 : vector<2x1x128xf32> to vector<2x128xf32>
    %83 = vector.extract_strided_slice %70 {offsets = [0, 6, 0], sizes = [2, 1, 128], strides = [1, 1, 1]} : vector<2x8x128xf32> to vector<2x1x128xf32>
    %84 = vector.shape_cast %83 : vector<2x1x128xf32> to vector<2x128xf32>
    %85 = vector.extract_strided_slice %70 {offsets = [0, 7, 0], sizes = [2, 1, 128], strides = [1, 1, 1]} : vector<2x8x128xf32> to vector<2x1x128xf32>
    %86 = vector.shape_cast %85 : vector<2x1x128xf32> to vector<2x128xf32>
    %c0_34 = arith.constant 0 : index
    %c0_35 = arith.constant 0 : index
    %87 = vector.load %arg9[%c0_34, %c0_35] : memref<32x128xbf16, #tpu.memory_space<vmem>>, vector<32x128xbf16>
    %c0_36 = arith.constant 0 : index
    %c0_37 = arith.constant 0 : index
    %88 = vector.load %arg12[%c0_36, %c0_37] : memref<1x32xf32, #tpu.memory_space<vmem>>, vector<1x32xf32>
    %89 = vector.shape_cast %88 : vector<1x32xf32> to vector<32xf32>
    %90 = tpu.iota {dimensions = array<i32: 1>} : vector<2x8xi32>
    %cst_38 = arith.constant 0.000000e+00 : f32
    %91 = vector.broadcast %cst_38 : f32 to vector<2x32xf32>
    %cst_39 = arith.constant 0.000000e+00 : f32
    %92 = vector.broadcast %cst_39 : f32 to vector<2x32xf32>
    %cst_40 = arith.constant 0.000000e+00 : f32
    %93 = vector.broadcast %cst_40 : f32 to vector<2x8xf32>
    %94 = arith.truncf %91 : vector<2x32xf32> to vector<2x32xbf16>
    %cst_41 = arith.constant dense<0.000000e+00> : vector<2x128xf32>
    %95 = tpu.matmul %94, %87, %cst_41 {dimension_numbers = #tpu.dot_dimension_numbers<[1], [0], [0], [1], [0, 0, 1, 1], [], []>} : vector<2x32xbf16>, vector<32x128xbf16>, vector<2x128xf32> -> vector<2x128xf32>
    %96 = arith.addf %72, %95 : vector<2x128xf32>
    %97 = vector.extract_strided_slice %96 {offsets = [0, 0], sizes = [2, 96], strides = [1, 1]} : vector<2x128xf32> to vector<2x96xf32>
    %98 = arith.negf %97 : vector<2x96xf32>
    %99 = math.exp %98 : vector<2x96xf32>
    %cst_42 = arith.constant 1.000000e+00 : f32
    %100 = vector.broadcast %cst_42 : f32 to vector<2x96xf32>
    %101 = arith.addf %100, %99 : vector<2x96xf32>
    %102 = arith.divf %100, %101 : vector<2x96xf32>
    %103 = vector.extract_strided_slice %96 {offsets = [0, 96], sizes = [2, 32], strides = [1, 1]} : vector<2x128xf32> to vector<2x32xf32>
    %104 = math.tanh %103 : vector<2x32xf32>
    %105 = vector.extract_strided_slice %102 {offsets = [0, 0], sizes = [2, 32], strides = [1, 1]} : vector<2x96xf32> to vector<2x32xf32>
    %106 = vector.extract_strided_slice %102 {offsets = [0, 32], sizes = [2, 32], strides = [1, 1]} : vector<2x96xf32> to vector<2x32xf32>
    %107 = vector.extract_strided_slice %102 {offsets = [0, 64], sizes = [2, 32], strides = [1, 1]} : vector<2x96xf32> to vector<2x32xf32>
    %108 = arith.mulf %106, %92 : vector<2x32xf32>
    %109 = arith.mulf %105, %104 : vector<2x32xf32>
    %110 = arith.addf %108, %109 : vector<2x32xf32>
    %111 = math.tanh %110 : vector<2x32xf32>
    %112 = arith.mulf %107, %111 : vector<2x32xf32>
    %113 = vector.shape_cast %89 : vector<32xf32> to vector<1x32xf32>
    %114 = vector.broadcast %113 : vector<1x32xf32> to vector<2x32xf32>
    %115 = arith.mulf %112, %114 : vector<2x32xf32>
    %cst_43 = arith.constant dense<0.000000e+00> : vector<2xf32>
    %116 = vector.multi_reduction <add>, %115, %cst_43 [1] : vector<2x32xf32> to vector<2xf32>
    %117 = vector.shape_cast %116 : vector<2xf32> to vector<2x1xf32>
    %c0_i32 = arith.constant 0 : i32
    %118 = vector.broadcast %c0_i32 : i32 to vector<2x8xi32>
    %119 = arith.cmpi eq, %90, %118 : vector<2x8xi32>
    %cst_44 = arith.constant 0.000000e+00 : f32
    %120 = vector.shape_cast %117 : vector<2x1xf32> to vector<2x1xf32>
    %121 = vector.broadcast %120 : vector<2x1xf32> to vector<2x8xf32>
    %122 = vector.broadcast %cst_44 : f32 to vector<2x8xf32>
    %123 = arith.select %119, %121, %122 : vector<2x8xi1>, vector<2x8xf32>
    %124 = arith.addf %93, %123 : vector<2x8xf32>
    %125 = arith.truncf %112 : vector<2x32xf32> to vector<2x32xbf16>
    %cst_45 = arith.constant dense<0.000000e+00> : vector<2x128xf32>
    %126 = tpu.matmul %125, %87, %cst_45 {dimension_numbers = #tpu.dot_dimension_numbers<[1], [0], [0], [1], [0, 0, 1, 1], [], []>} : vector<2x32xbf16>, vector<32x128xbf16>, vector<2x128xf32> -> vector<2x128xf32>
    %127 = arith.addf %74, %126 : vector<2x128xf32>
    %128 = vector.extract_strided_slice %127 {offsets = [0, 0], sizes = [2, 96], strides = [1, 1]} : vector<2x128xf32> to vector<2x96xf32>
    %129 = arith.negf %128 : vector<2x96xf32>
    %130 = math.exp %129 : vector<2x96xf32>
    %cst_46 = arith.constant 1.000000e+00 : f32
    %131 = vector.broadcast %cst_46 : f32 to vector<2x96xf32>
    %132 = arith.addf %131, %130 : vector<2x96xf32>
    %133 = arith.divf %131, %132 : vector<2x96xf32>
    %134 = vector.extract_strided_slice %127 {offsets = [0, 96], sizes = [2, 32], strides = [1, 1]} : vector<2x128xf32> to vector<2x32xf32>
    %135 = math.tanh %134 : vector<2x32xf32>
    %136 = vector.extract_strided_slice %133 {offsets = [0, 0], sizes = [2, 32], strides = [1, 1]} : vector<2x96xf32> to vector<2x32xf32>
    %137 = vector.extract_strided_slice %133 {offsets = [0, 32], sizes = [2, 32], strides = [1, 1]} : vector<2x96xf32> to vector<2x32xf32>
    %138 = vector.extract_strided_slice %133 {offsets = [0, 64], sizes = [2, 32], strides = [1, 1]} : vector<2x96xf32> to vector<2x32xf32>
    %139 = arith.mulf %137, %110 : vector<2x32xf32>
    %140 = arith.mulf %136, %135 : vector<2x32xf32>
    %141 = arith.addf %139, %140 : vector<2x32xf32>
    %142 = math.tanh %141 : vector<2x32xf32>
    %143 = arith.mulf %138, %142 : vector<2x32xf32>
    %144 = vector.shape_cast %89 : vector<32xf32> to vector<1x32xf32>
    %145 = vector.broadcast %144 : vector<1x32xf32> to vector<2x32xf32>
    %146 = arith.mulf %143, %145 : vector<2x32xf32>
    %cst_47 = arith.constant dense<0.000000e+00> : vector<2xf32>
    %147 = vector.multi_reduction <add>, %146, %cst_47 [1] : vector<2x32xf32> to vector<2xf32>
    %148 = vector.shape_cast %147 : vector<2xf32> to vector<2x1xf32>
    %c1_i32 = arith.constant 1 : i32
    %149 = vector.broadcast %c1_i32 : i32 to vector<2x8xi32>
    %150 = arith.cmpi eq, %90, %149 : vector<2x8xi32>
    %cst_48 = arith.constant 0.000000e+00 : f32
    %151 = vector.shape_cast %148 : vector<2x1xf32> to vector<2x1xf32>
    %152 = vector.broadcast %151 : vector<2x1xf32> to vector<2x8xf32>
    %153 = vector.broadcast %cst_48 : f32 to vector<2x8xf32>
    %154 = arith.select %150, %152, %153 : vector<2x8xi1>, vector<2x8xf32>
    %155 = arith.addf %124, %154 : vector<2x8xf32>
    %156 = arith.truncf %143 : vector<2x32xf32> to vector<2x32xbf16>
    %cst_49 = arith.constant dense<0.000000e+00> : vector<2x128xf32>
    %157 = tpu.matmul %156, %87, %cst_49 {dimension_numbers = #tpu.dot_dimension_numbers<[1], [0], [0], [1], [0, 0, 1, 1], [], []>} : vector<2x32xbf16>, vector<32x128xbf16>, vector<2x128xf32> -> vector<2x128xf32>
    %158 = arith.addf %76, %157 : vector<2x128xf32>
    %159 = vector.extract_strided_slice %158 {offsets = [0, 0], sizes = [2, 96], strides = [1, 1]} : vector<2x128xf32> to vector<2x96xf32>
    %160 = arith.negf %159 : vector<2x96xf32>
    %161 = math.exp %160 : vector<2x96xf32>
    %cst_50 = arith.constant 1.000000e+00 : f32
    %162 = vector.broadcast %cst_50 : f32 to vector<2x96xf32>
    %163 = arith.addf %162, %161 : vector<2x96xf32>
    %164 = arith.divf %162, %163 : vector<2x96xf32>
    %165 = vector.extract_strided_slice %158 {offsets = [0, 96], sizes = [2, 32], strides = [1, 1]} : vector<2x128xf32> to vector<2x32xf32>
    %166 = math.tanh %165 : vector<2x32xf32>
    %167 = vector.extract_strided_slice %164 {offsets = [0, 0], sizes = [2, 32], strides = [1, 1]} : vector<2x96xf32> to vector<2x32xf32>
    %168 = vector.extract_strided_slice %164 {offsets = [0, 32], sizes = [2, 32], strides = [1, 1]} : vector<2x96xf32> to vector<2x32xf32>
    %169 = vector.extract_strided_slice %164 {offsets = [0, 64], sizes = [2, 32], strides = [1, 1]} : vector<2x96xf32> to vector<2x32xf32>
    %170 = arith.mulf %168, %141 : vector<2x32xf32>
    %171 = arith.mulf %167, %166 : vector<2x32xf32>
    %172 = arith.addf %170, %171 : vector<2x32xf32>
    %173 = math.tanh %172 : vector<2x32xf32>
    %174 = arith.mulf %169, %173 : vector<2x32xf32>
    %175 = vector.shape_cast %89 : vector<32xf32> to vector<1x32xf32>
    %176 = vector.broadcast %175 : vector<1x32xf32> to vector<2x32xf32>
    %177 = arith.mulf %174, %176 : vector<2x32xf32>
    %cst_51 = arith.constant dense<0.000000e+00> : vector<2xf32>
    %178 = vector.multi_reduction <add>, %177, %cst_51 [1] : vector<2x32xf32> to vector<2xf32>
    %179 = vector.shape_cast %178 : vector<2xf32> to vector<2x1xf32>
    %c2_i32 = arith.constant 2 : i32
    %180 = vector.broadcast %c2_i32 : i32 to vector<2x8xi32>
    %181 = arith.cmpi eq, %90, %180 : vector<2x8xi32>
    %cst_52 = arith.constant 0.000000e+00 : f32
    %182 = vector.shape_cast %179 : vector<2x1xf32> to vector<2x1xf32>
    %183 = vector.broadcast %182 : vector<2x1xf32> to vector<2x8xf32>
    %184 = vector.broadcast %cst_52 : f32 to vector<2x8xf32>
    %185 = arith.select %181, %183, %184 : vector<2x8xi1>, vector<2x8xf32>
    %186 = arith.addf %155, %185 : vector<2x8xf32>
    %187 = arith.truncf %174 : vector<2x32xf32> to vector<2x32xbf16>
    %cst_53 = arith.constant dense<0.000000e+00> : vector<2x128xf32>
    %188 = tpu.matmul %187, %87, %cst_53 {dimension_numbers = #tpu.dot_dimension_numbers<[1], [0], [0], [1], [0, 0, 1, 1], [], []>} : vector<2x32xbf16>, vector<32x128xbf16>, vector<2x128xf32> -> vector<2x128xf32>
    %189 = arith.addf %78, %188 : vector<2x128xf32>
    %190 = vector.extract_strided_slice %189 {offsets = [0, 0], sizes = [2, 96], strides = [1, 1]} : vector<2x128xf32> to vector<2x96xf32>
    %191 = arith.negf %190 : vector<2x96xf32>
    %192 = math.exp %191 : vector<2x96xf32>
    %cst_54 = arith.constant 1.000000e+00 : f32
    %193 = vector.broadcast %cst_54 : f32 to vector<2x96xf32>
    %194 = arith.addf %193, %192 : vector<2x96xf32>
    %195 = arith.divf %193, %194 : vector<2x96xf32>
    %196 = vector.extract_strided_slice %189 {offsets = [0, 96], sizes = [2, 32], strides = [1, 1]} : vector<2x128xf32> to vector<2x32xf32>
    %197 = math.tanh %196 : vector<2x32xf32>
    %198 = vector.extract_strided_slice %195 {offsets = [0, 0], sizes = [2, 32], strides = [1, 1]} : vector<2x96xf32> to vector<2x32xf32>
    %199 = vector.extract_strided_slice %195 {offsets = [0, 32], sizes = [2, 32], strides = [1, 1]} : vector<2x96xf32> to vector<2x32xf32>
    %200 = vector.extract_strided_slice %195 {offsets = [0, 64], sizes = [2, 32], strides = [1, 1]} : vector<2x96xf32> to vector<2x32xf32>
    %201 = arith.mulf %199, %172 : vector<2x32xf32>
    %202 = arith.mulf %198, %197 : vector<2x32xf32>
    %203 = arith.addf %201, %202 : vector<2x32xf32>
    %204 = math.tanh %203 : vector<2x32xf32>
    %205 = arith.mulf %200, %204 : vector<2x32xf32>
    %206 = vector.shape_cast %89 : vector<32xf32> to vector<1x32xf32>
    %207 = vector.broadcast %206 : vector<1x32xf32> to vector<2x32xf32>
    %208 = arith.mulf %205, %207 : vector<2x32xf32>
    %cst_55 = arith.constant dense<0.000000e+00> : vector<2xf32>
    %209 = vector.multi_reduction <add>, %208, %cst_55 [1] : vector<2x32xf32> to vector<2xf32>
    %210 = vector.shape_cast %209 : vector<2xf32> to vector<2x1xf32>
    %c3_i32 = arith.constant 3 : i32
    %211 = vector.broadcast %c3_i32 : i32 to vector<2x8xi32>
    %212 = arith.cmpi eq, %90, %211 : vector<2x8xi32>
    %cst_56 = arith.constant 0.000000e+00 : f32
    %213 = vector.shape_cast %210 : vector<2x1xf32> to vector<2x1xf32>
    %214 = vector.broadcast %213 : vector<2x1xf32> to vector<2x8xf32>
    %215 = vector.broadcast %cst_56 : f32 to vector<2x8xf32>
    %216 = arith.select %212, %214, %215 : vector<2x8xi1>, vector<2x8xf32>
    %217 = arith.addf %186, %216 : vector<2x8xf32>
    %218 = arith.truncf %205 : vector<2x32xf32> to vector<2x32xbf16>
    %cst_57 = arith.constant dense<0.000000e+00> : vector<2x128xf32>
    %219 = tpu.matmul %218, %87, %cst_57 {dimension_numbers = #tpu.dot_dimension_numbers<[1], [0], [0], [1], [0, 0, 1, 1], [], []>} : vector<2x32xbf16>, vector<32x128xbf16>, vector<2x128xf32> -> vector<2x128xf32>
    %220 = arith.addf %80, %219 : vector<2x128xf32>
    %221 = vector.extract_strided_slice %220 {offsets = [0, 0], sizes = [2, 96], strides = [1, 1]} : vector<2x128xf32> to vector<2x96xf32>
    %222 = arith.negf %221 : vector<2x96xf32>
    %223 = math.exp %222 : vector<2x96xf32>
    %cst_58 = arith.constant 1.000000e+00 : f32
    %224 = vector.broadcast %cst_58 : f32 to vector<2x96xf32>
    %225 = arith.addf %224, %223 : vector<2x96xf32>
    %226 = arith.divf %224, %225 : vector<2x96xf32>
    %227 = vector.extract_strided_slice %220 {offsets = [0, 96], sizes = [2, 32], strides = [1, 1]} : vector<2x128xf32> to vector<2x32xf32>
    %228 = math.tanh %227 : vector<2x32xf32>
    %229 = vector.extract_strided_slice %226 {offsets = [0, 0], sizes = [2, 32], strides = [1, 1]} : vector<2x96xf32> to vector<2x32xf32>
    %230 = vector.extract_strided_slice %226 {offsets = [0, 32], sizes = [2, 32], strides = [1, 1]} : vector<2x96xf32> to vector<2x32xf32>
    %231 = vector.extract_strided_slice %226 {offsets = [0, 64], sizes = [2, 32], strides = [1, 1]} : vector<2x96xf32> to vector<2x32xf32>
    %232 = arith.mulf %230, %203 : vector<2x32xf32>
    %233 = arith.mulf %229, %228 : vector<2x32xf32>
    %234 = arith.addf %232, %233 : vector<2x32xf32>
    %235 = math.tanh %234 : vector<2x32xf32>
    %236 = arith.mulf %231, %235 : vector<2x32xf32>
    %237 = vector.shape_cast %89 : vector<32xf32> to vector<1x32xf32>
    %238 = vector.broadcast %237 : vector<1x32xf32> to vector<2x32xf32>
    %239 = arith.mulf %236, %238 : vector<2x32xf32>
    %cst_59 = arith.constant dense<0.000000e+00> : vector<2xf32>
    %240 = vector.multi_reduction <add>, %239, %cst_59 [1] : vector<2x32xf32> to vector<2xf32>
    %241 = vector.shape_cast %240 : vector<2xf32> to vector<2x1xf32>
    %c4_i32 = arith.constant 4 : i32
    %242 = vector.broadcast %c4_i32 : i32 to vector<2x8xi32>
    %243 = arith.cmpi eq, %90, %242 : vector<2x8xi32>
    %cst_60 = arith.constant 0.000000e+00 : f32
    %244 = vector.shape_cast %241 : vector<2x1xf32> to vector<2x1xf32>
    %245 = vector.broadcast %244 : vector<2x1xf32> to vector<2x8xf32>
    %246 = vector.broadcast %cst_60 : f32 to vector<2x8xf32>
    %247 = arith.select %243, %245, %246 : vector<2x8xi1>, vector<2x8xf32>
    %248 = arith.addf %217, %247 : vector<2x8xf32>
    %249 = arith.truncf %236 : vector<2x32xf32> to vector<2x32xbf16>
    %cst_61 = arith.constant dense<0.000000e+00> : vector<2x128xf32>
    %250 = tpu.matmul %249, %87, %cst_61 {dimension_numbers = #tpu.dot_dimension_numbers<[1], [0], [0], [1], [0, 0, 1, 1], [], []>} : vector<2x32xbf16>, vector<32x128xbf16>, vector<2x128xf32> -> vector<2x128xf32>
    %251 = arith.addf %82, %250 : vector<2x128xf32>
    %252 = vector.extract_strided_slice %251 {offsets = [0, 0], sizes = [2, 96], strides = [1, 1]} : vector<2x128xf32> to vector<2x96xf32>
    %253 = arith.negf %252 : vector<2x96xf32>
    %254 = math.exp %253 : vector<2x96xf32>
    %cst_62 = arith.constant 1.000000e+00 : f32
    %255 = vector.broadcast %cst_62 : f32 to vector<2x96xf32>
    %256 = arith.addf %255, %254 : vector<2x96xf32>
    %257 = arith.divf %255, %256 : vector<2x96xf32>
    %258 = vector.extract_strided_slice %251 {offsets = [0, 96], sizes = [2, 32], strides = [1, 1]} : vector<2x128xf32> to vector<2x32xf32>
    %259 = math.tanh %258 : vector<2x32xf32>
    %260 = vector.extract_strided_slice %257 {offsets = [0, 0], sizes = [2, 32], strides = [1, 1]} : vector<2x96xf32> to vector<2x32xf32>
    %261 = vector.extract_strided_slice %257 {offsets = [0, 32], sizes = [2, 32], strides = [1, 1]} : vector<2x96xf32> to vector<2x32xf32>
    %262 = vector.extract_strided_slice %257 {offsets = [0, 64], sizes = [2, 32], strides = [1, 1]} : vector<2x96xf32> to vector<2x32xf32>
    %263 = arith.mulf %261, %234 : vector<2x32xf32>
    %264 = arith.mulf %260, %259 : vector<2x32xf32>
    %265 = arith.addf %263, %264 : vector<2x32xf32>
    %266 = math.tanh %265 : vector<2x32xf32>
    %267 = arith.mulf %262, %266 : vector<2x32xf32>
    %268 = vector.shape_cast %89 : vector<32xf32> to vector<1x32xf32>
    %269 = vector.broadcast %268 : vector<1x32xf32> to vector<2x32xf32>
    %270 = arith.mulf %267, %269 : vector<2x32xf32>
    %cst_63 = arith.constant dense<0.000000e+00> : vector<2xf32>
    %271 = vector.multi_reduction <add>, %270, %cst_63 [1] : vector<2x32xf32> to vector<2xf32>
    %272 = vector.shape_cast %271 : vector<2xf32> to vector<2x1xf32>
    %c5_i32 = arith.constant 5 : i32
    %273 = vector.broadcast %c5_i32 : i32 to vector<2x8xi32>
    %274 = arith.cmpi eq, %90, %273 : vector<2x8xi32>
    %cst_64 = arith.constant 0.000000e+00 : f32
    %275 = vector.shape_cast %272 : vector<2x1xf32> to vector<2x1xf32>
    %276 = vector.broadcast %275 : vector<2x1xf32> to vector<2x8xf32>
    %277 = vector.broadcast %cst_64 : f32 to vector<2x8xf32>
    %278 = arith.select %274, %276, %277 : vector<2x8xi1>, vector<2x8xf32>
    %279 = arith.addf %248, %278 : vector<2x8xf32>
    %280 = arith.truncf %267 : vector<2x32xf32> to vector<2x32xbf16>
    %cst_65 = arith.constant dense<0.000000e+00> : vector<2x128xf32>
    %281 = tpu.matmul %280, %87, %cst_65 {dimension_numbers = #tpu.dot_dimension_numbers<[1], [0], [0], [1], [0, 0, 1, 1], [], []>} : vector<2x32xbf16>, vector<32x128xbf16>, vector<2x128xf32> -> vector<2x128xf32>
    %282 = arith.addf %84, %281 : vector<2x128xf32>
    %283 = vector.extract_strided_slice %282 {offsets = [0, 0], sizes = [2, 96], strides = [1, 1]} : vector<2x128xf32> to vector<2x96xf32>
    %284 = arith.negf %283 : vector<2x96xf32>
    %285 = math.exp %284 : vector<2x96xf32>
    %cst_66 = arith.constant 1.000000e+00 : f32
    %286 = vector.broadcast %cst_66 : f32 to vector<2x96xf32>
    %287 = arith.addf %286, %285 : vector<2x96xf32>
    %288 = arith.divf %286, %287 : vector<2x96xf32>
    %289 = vector.extract_strided_slice %282 {offsets = [0, 96], sizes = [2, 32], strides = [1, 1]} : vector<2x128xf32> to vector<2x32xf32>
    %290 = math.tanh %289 : vector<2x32xf32>
    %291 = vector.extract_strided_slice %288 {offsets = [0, 0], sizes = [2, 32], strides = [1, 1]} : vector<2x96xf32> to vector<2x32xf32>
    %292 = vector.extract_strided_slice %288 {offsets = [0, 32], sizes = [2, 32], strides = [1, 1]} : vector<2x96xf32> to vector<2x32xf32>
    %293 = vector.extract_strided_slice %288 {offsets = [0, 64], sizes = [2, 32], strides = [1, 1]} : vector<2x96xf32> to vector<2x32xf32>
    %294 = arith.mulf %292, %265 : vector<2x32xf32>
    %295 = arith.mulf %291, %290 : vector<2x32xf32>
    %296 = arith.addf %294, %295 : vector<2x32xf32>
    %297 = math.tanh %296 : vector<2x32xf32>
    %298 = arith.mulf %293, %297 : vector<2x32xf32>
    %299 = vector.shape_cast %89 : vector<32xf32> to vector<1x32xf32>
    %300 = vector.broadcast %299 : vector<1x32xf32> to vector<2x32xf32>
    %301 = arith.mulf %298, %300 : vector<2x32xf32>
    %cst_67 = arith.constant dense<0.000000e+00> : vector<2xf32>
    %302 = vector.multi_reduction <add>, %301, %cst_67 [1] : vector<2x32xf32> to vector<2xf32>
    %303 = vector.shape_cast %302 : vector<2xf32> to vector<2x1xf32>
    %c6_i32 = arith.constant 6 : i32
    %304 = vector.broadcast %c6_i32 : i32 to vector<2x8xi32>
    %305 = arith.cmpi eq, %90, %304 : vector<2x8xi32>
    %cst_68 = arith.constant 0.000000e+00 : f32
    %306 = vector.shape_cast %303 : vector<2x1xf32> to vector<2x1xf32>
    %307 = vector.broadcast %306 : vector<2x1xf32> to vector<2x8xf32>
    %308 = vector.broadcast %cst_68 : f32 to vector<2x8xf32>
    %309 = arith.select %305, %307, %308 : vector<2x8xi1>, vector<2x8xf32>
    %310 = arith.addf %279, %309 : vector<2x8xf32>
    %311 = arith.truncf %298 : vector<2x32xf32> to vector<2x32xbf16>
    %cst_69 = arith.constant dense<0.000000e+00> : vector<2x128xf32>
    %312 = tpu.matmul %311, %87, %cst_69 {dimension_numbers = #tpu.dot_dimension_numbers<[1], [0], [0], [1], [0, 0, 1, 1], [], []>} : vector<2x32xbf16>, vector<32x128xbf16>, vector<2x128xf32> -> vector<2x128xf32>
    %313 = arith.addf %86, %312 : vector<2x128xf32>
    %314 = vector.extract_strided_slice %313 {offsets = [0, 0], sizes = [2, 96], strides = [1, 1]} : vector<2x128xf32> to vector<2x96xf32>
    %315 = arith.negf %314 : vector<2x96xf32>
    %316 = math.exp %315 : vector<2x96xf32>
    %cst_70 = arith.constant 1.000000e+00 : f32
    %317 = vector.broadcast %cst_70 : f32 to vector<2x96xf32>
    %318 = arith.addf %317, %316 : vector<2x96xf32>
    %319 = arith.divf %317, %318 : vector<2x96xf32>
    %320 = vector.extract_strided_slice %313 {offsets = [0, 96], sizes = [2, 32], strides = [1, 1]} : vector<2x128xf32> to vector<2x32xf32>
    %321 = math.tanh %320 : vector<2x32xf32>
    %322 = vector.extract_strided_slice %319 {offsets = [0, 0], sizes = [2, 32], strides = [1, 1]} : vector<2x96xf32> to vector<2x32xf32>
    %323 = vector.extract_strided_slice %319 {offsets = [0, 32], sizes = [2, 32], strides = [1, 1]} : vector<2x96xf32> to vector<2x32xf32>
    %324 = vector.extract_strided_slice %319 {offsets = [0, 64], sizes = [2, 32], strides = [1, 1]} : vector<2x96xf32> to vector<2x32xf32>
    %325 = arith.mulf %323, %296 : vector<2x32xf32>
    %326 = arith.mulf %322, %321 : vector<2x32xf32>
    %327 = arith.addf %325, %326 : vector<2x32xf32>
    %328 = math.tanh %327 : vector<2x32xf32>
    %329 = arith.mulf %324, %328 : vector<2x32xf32>
    %330 = vector.shape_cast %89 : vector<32xf32> to vector<1x32xf32>
    %331 = vector.broadcast %330 : vector<1x32xf32> to vector<2x32xf32>
    %332 = arith.mulf %329, %331 : vector<2x32xf32>
    %cst_71 = arith.constant dense<0.000000e+00> : vector<2xf32>
    %333 = vector.multi_reduction <add>, %332, %cst_71 [1] : vector<2x32xf32> to vector<2xf32>
    %334 = vector.shape_cast %333 : vector<2xf32> to vector<2x1xf32>
    %c7_i32 = arith.constant 7 : i32
    %335 = vector.broadcast %c7_i32 : i32 to vector<2x8xi32>
    %336 = arith.cmpi eq, %90, %335 : vector<2x8xi32>
    %cst_72 = arith.constant 0.000000e+00 : f32
    %337 = vector.shape_cast %334 : vector<2x1xf32> to vector<2x1xf32>
    %338 = vector.broadcast %337 : vector<2x1xf32> to vector<2x8xf32>
    %339 = vector.broadcast %cst_72 : f32 to vector<2x8xf32>
    %340 = arith.select %336, %338, %339 : vector<2x8xi1>, vector<2x8xf32>
    %341 = arith.addf %310, %340 : vector<2x8xf32>
    %342 = arith.addf %13, %341 : vector<2x8xf32>
    %c0_73 = arith.constant 0 : index
    %343 = memref.load %arg13[%c0_73] : memref<1xf32, #tpu.memory_space<smem>>
    %344 = vector.broadcast %343 : f32 to vector<2x8xf32>
    %345 = arith.addf %342, %344 : vector<2x8xf32>
    %cst_74 = arith.constant dense<0xFF800000> : vector<2xf32>
    %346 = vector.multi_reduction <maximumf>, %345, %cst_74 [1] : vector<2x8xf32> to vector<2xf32>
    %347 = vector.shape_cast %346 : vector<2xf32> to vector<2x1xf32>
    %348 = vector.broadcast %347 : vector<2x1xf32> to vector<2x8xf32>
    %349 = arith.subf %345, %348 : vector<2x8xf32>
    %350 = math.exp %349 : vector<2x8xf32>
    %cst_75 = arith.constant dense<0.000000e+00> : vector<2xf32>
    %351 = vector.multi_reduction <add>, %350, %cst_75 [1] : vector<2x8xf32> to vector<2xf32>
    %352 = vector.shape_cast %351 : vector<2xf32> to vector<2x1xf32>
    %353 = vector.broadcast %347 : vector<2x1xf32> to vector<2x8xf32>
    %354 = arith.subf %345, %353 : vector<2x8xf32>
    %355 = math.log %352 : vector<2x1xf32>
    %356 = vector.broadcast %355 : vector<2x1xf32> to vector<2x8xf32>
    %357 = arith.subf %354, %356 : vector<2x8xf32>
    %358 = vector.shape_cast %357 : vector<2x8xf32> to vector<2x1x8xf32>
    %c0_76 = arith.constant 0 : index
    %c0_77 = arith.constant 0 : index
    %c0_78 = arith.constant 0 : index
    %359 = vector.load %arg15[%c0_76, %c0_77, %c0_78] : memref<2x1x8xf32, #tpu.memory_space<vmem>>, vector<2x1x8xf32>
    tpu.vector_store %arg15[%c0_76, %c0_77, %c0_78], %358 {strides = array<i32>} : memref<2x1x8xf32, #tpu.memory_space<vmem>>, vector<2x1x8xf32>,
    return
  }
}

</mosaic_0001>

<llo_original>
// kernel: tpu_custom_call.1
$region0: #{tpu_custom_call.1}
  #allocation0 [shape = 'u32[]', space=smem, size = 0x4, offset = 0x4, fixed_abs, tag = 'smem constant byte address 0x4 - core index']
  #allocation1 [shape = 'u32[144,128]{1,0:T(1,128)}', space=vmem, size = 0x12000, scoped, tag = 'internal scratch']
  #allocation2 [shape = 'f32[1]{0:T(128)S(6)}', space=smem, size = 0x200, scoped, tag = 'scoped memory for tpu_custom_call.1']
  #allocation3 [shape = 'f32[1]{0:T(128)S(6)}', space=smem, size = 0x200, scoped, tag = 'scoped memory for tpu_custom_call.1']
  %s0 = inlined_call_operand.hbm [shape: f32[2,8,128], index: 0, kind: input, shape index: {}]
  %s1 = inlined_call_operand.hbm [shape: f32[2,8,32], index: 1, kind: input, shape index: {}]
  %s2 = inlined_call_operand.vmem [shape: f32[1,128], index: 2, kind: input, shape index: {}]
  %s3 = inlined_call_operand.vmem [shape: f32[1,32], index: 3, kind: input, shape index: {}]
  %s4 = inlined_call_operand.<no memory space> [shape: f32[1], index: 4, kind: input, shape index: {}]
  %s5 = inlined_call_operand.hbm [shape: bf16[128,128], index: 5, kind: input, shape index: {}]
  %s6 = inlined_call_operand.vmem [shape: bf16[32,128], index: 6, kind: input, shape index: {}]
  %s7 = inlined_call_operand.hbm [shape: bf16[32,128], index: 7, kind: input, shape index: {}]
  %s8 = inlined_call_operand.vmem [shape: bf16[32,128], index: 8, kind: input, shape index: {}]
  %s9 = inlined_call_operand.hbm [shape: bf16[32,128], index: 9, kind: input, shape index: {}]
  %s10 = inlined_call_operand.vmem [shape: f32[1,128], index: 10, kind: input, shape index: {}]
  %s11 = inlined_call_operand.vmem [shape: f32[1,128], index: 11, kind: input, shape index: {}]
  %s12 = inlined_call_operand.vmem [shape: f32[1,32], index: 12, kind: input, shape index: {}]
  %s13 = inlined_call_operand.<no memory space> [shape: f32[1], index: 13, kind: input, shape index: {}]
  %s14 = inlined_call_operand.hbm [shape: f32[2,1,8], index: 14, kind: output, shape index: {0}]
  %s15 = inlined_call_operand.hbm [shape: f32[2,1,8], index: 15, kind: output, shape index: {1}]
  %16 = xla_tuple %s14, %s15
  %s17 = sld [smem:[#allocation0]]
  $region94: #{tpu_custom_call.1} parent=0
    _
  %s19 = ssub.s32 1, %s17
  %s20 = scalar_select 0, %s19, %s17
  %21 = sst [smem:[#allocation2]] %s4
  %22 = sst [smem:[#allocation3]] %s13
  $region1: #{tpu_custom_call.1} parent=0
    #allocation4 [shape = 'u8[8192]{0}', space=vmem, size = 0x2000, scoped, tag = 'input window, operand 0, single buffered']
    #allocation5 [shape = 's32[1]{0}', space=sflag, size = 0x4, scoped, tag = 'scoped memory for tpu_custom_call.1']
    #allocation6 [shape = 's32[1]{0}', space=sflag, size = 0x4, scoped, tag = 'scoped memory for tpu_custom_call.1']
    #allocation7 [shape = 'u8[8192]{0}', space=vmem, size = 0x2000, scoped, tag = 'input window, operand 1, single buffered']
    #allocation8 [shape = 's32[1]{0}', space=sflag, size = 0x4, scoped, tag = 'scoped memory for tpu_custom_call.1']
    #allocation9 [shape = 'u8[32768]{0}', space=vmem, size = 0x8000, scoped, tag = 'input window, operand 5, single buffered']
    #allocation10 [shape = 'u8[8192]{0}', space=vmem, size = 0x2000, scoped, tag = 'input window, operand 7, single buffered']
    #allocation11 [shape = 's32[1]{0}', space=sflag, size = 0x4, scoped, tag = 'scoped memory for tpu_custom_call.1']
    #allocation12 [shape = 'u8[8192]{0}', space=vmem, size = 0x2000, scoped, tag = 'input window, operand 9, single buffered']
    #allocation13 [shape = 'u8[1024]{0}', space=vmem, size = 0x400, scoped, tag = 'output window, operand 0, single buffered']
    #allocation14 [shape = 'u8[1024]{0}', space=vmem, size = 0x400, scoped, tag = 'output window, operand 1, single buffered']
    #allocation15 [shape = 's32[1]{0}', space=sflag, size = 0x4, scoped, tag = 'scoped memory for tpu_custom_call.1']
    %23 = vsyncpa [#allocation5], 0
    %24 = vsyncpa [#allocation8], 0
    %25 = vsyncpa [#allocation11], 0
    %26 = vsyncpa [#allocation6], 0
    %27 = vsyncpa [#allocation15], 0
    // Predicated region
    $region2: #{tpu_custom_call.1} parent=1 // pred_check
      _
    $region3: #{tpu_custom_call.1} parent=1 // pred_check_branch
      %29 = sbr.rel (0) target = $region5
    $region4: #{tpu_custom_call.1} parent=1 // pred_region
      %s31 = ssub.s32 256, 256
      %32 = vsyncadd [#allocation5], %s31
      %s33 = sshll.u32 [#allocation4], 4
      %s34 = int_to_ptr.vmem [resolvable:$true] %s33
      %39 = dma.hbm_to_vmem [thread:$0]  %s0, 256, %s34, [#allocation5], 128, 128, 8
    $region5: #{tpu_custom_call.1} parent=1 // pred_fallthru
      _
    // Predicated region
    $region6: #{tpu_custom_call.1} parent=1 // pred_check
      _
    $region7: #{tpu_custom_call.1} parent=1 // pred_check_branch
      %41 = sbr.rel (0) target = $region9
    $region8: #{tpu_custom_call.1} parent=1 // pred_region
      %s43 = ssub.s32 256, 256
      %44 = vsyncadd [#allocation8], %s43
      %s45 = sshll.u32 [#allocation7], 4
      %s46 = int_to_ptr.vmem [resolvable:$true] %s45
      %51 = dma.hbm_to_vmem [thread:$0]  %s1, 256, %s46, [#allocation8], 128, 128, 8
    $region9: #{tpu_custom_call.1} parent=1 // pred_fallthru
      _
    // Predicated region
    $region10: #{tpu_custom_call.1} parent=1 // pred_check
      _
    $region11: #{tpu_custom_call.1} parent=1 // pred_check_branch
      %53 = sbr.rel (0) target = $region13
    $region12: #{tpu_custom_call.1} parent=1 // pred_region
      _
    $region13: #{tpu_custom_call.1} parent=1 // pred_fallthru
      _
    // Predicated region
    $region14: #{tpu_custom_call.1} parent=1 // pred_check
      _
    $region15: #{tpu_custom_call.1} parent=1 // pred_check_branch
      %55 = sbr.rel (0) target = $region17
    $region16: #{tpu_custom_call.1} parent=1 // pred_region
      _
    $region17: #{tpu_custom_call.1} parent=1 // pred_fallthru
      _
    // Predicated region
    $region18: #{tpu_custom_call.1} parent=1 // pred_check
      _
    $region19: #{tpu_custom_call.1} parent=1 // pred_check_branch
      %57 = sbr.rel (0) target = $region21
    $region20: #{tpu_custom_call.1} parent=1 // pred_region
      _
    $region21: #{tpu_custom_call.1} parent=1 // pred_fallthru
      _
    // Predicated region
    $region22: #{tpu_custom_call.1} parent=1 // pred_check
      _
    $region23: #{tpu_custom_call.1} parent=1 // pred_check_branch
      %59 = sbr.rel (0) target = $region25
    $region24: #{tpu_custom_call.1} parent=1 // pred_region
      %s61 = ssub.s32 1024, 1024
      %62 = vsyncadd [#allocation8], %s61
      %s63 = sshll.u32 [#allocation9], 4
      %s64 = int_to_ptr.vmem [resolvable:$true] %s63
      %69 = dma.hbm_to_vmem [thread:$0]  %s5, 1024, %s64, [#allocation8], 64, 64, 4
    $region25: #{tpu_custom_call.1} parent=1 // pred_fallthru
      _
    // Predicated region
    $region26: #{tpu_custom_call.1} parent=1 // pred_check
      _
    $region27: #{tpu_custom_call.1} parent=1 // pred_check_branch
      %71 = sbr.rel (0) target = $region29
    $region28: #{tpu_custom_call.1} parent=1 // pred_region
      _
    $region29: #{tpu_custom_call.1} parent=1 // pred_fallthru
      _
    // Predicated region
    $region30: #{tpu_custom_call.1} parent=1 // pred_check
      _
    $region31: #{tpu_custom_call.1} parent=1 // pred_check_branch
      %73 = sbr.rel (0) target = $region33
    $region32: #{tpu_custom_call.1} parent=1 // pred_region
      %s75 = ssub.s32 256, 256
      %76 = vsyncadd [#allocation11], %s75
      %s77 = sshll.u32 [#allocation10], 4
      %s78 = int_to_ptr.vmem [resolvable:$true] %s77
      %83 = dma.hbm_to_vmem [thread:$0]  %s7, 256, %s78, [#allocation11], 64, 64, 4
    $region33: #{tpu_custom_call.1} parent=1 // pred_fallthru
      _
    // Predicated region
    $region34: #{tpu_custom_call.1} parent=1 // pred_check
      _
    $region35: #{tpu_custom_call.1} parent=1 // pred_check_branch
      %85 = sbr.rel (0) target = $region37
    $region36: #{tpu_custom_call.1} parent=1 // pred_region
      _
    $region37: #{tpu_custom_call.1} parent=1 // pred_fallthru
      _
    // Predicated region
    $region38: #{tpu_custom_call.1} parent=1 // pred_check
      _
    $region39: #{tpu_custom_call.1} parent=1 // pred_check_branch
      %87 = sbr.rel (0) target = $region41
    $region40: #{tpu_custom_call.1} parent=1 // pred_region
      %s89 = ssub.s32 256, 256
      %90 = vsyncadd [#allocation11], %s89
      %s91 = sshll.u32 [#allocation12], 4
      %s92 = int_to_ptr.vmem [resolvable:$true] %s91
      %97 = dma.hbm_to_vmem [thread:$0]  %s9, 256, %s92, [#allocation11], 64, 64, 4
    $region41: #{tpu_custom_call.1} parent=1 // pred_fallthru
      _
    // Predicated region
    $region42: #{tpu_custom_call.1} parent=1 // pred_check
      _
    $region43: #{tpu_custom_call.1} parent=1 // pred_check_branch
      %99 = sbr.rel (0) target = $region45
    $region44: #{tpu_custom_call.1} parent=1 // pred_region
      _
    $region45: #{tpu_custom_call.1} parent=1 // pred_fallthru
      _
    // Predicated region
    $region46: #{tpu_custom_call.1} parent=1 // pred_check
      _
    $region47: #{tpu_custom_call.1} parent=1 // pred_check_branch
      %101 = sbr.rel (0) target = $region49
    $region48: #{tpu_custom_call.1} parent=1 // pred_region
      _
    $region49: #{tpu_custom_call.1} parent=1 // pred_fallthru
      _
    // Predicated region
    $region50: #{tpu_custom_call.1} parent=1 // pred_check
      _
    $region51: #{tpu_custom_call.1} parent=1 // pred_check_branch
      %103 = sbr.rel (0) target = $region53
    $region52: #{tpu_custom_call.1} parent=1 // pred_region
      _
    $region53: #{tpu_custom_call.1} parent=1 // pred_fallthru
      _
    // Predicated region
    $region54: #{tpu_custom_call.1} parent=1 // pred_check
      _
    $region55: #{tpu_custom_call.1} parent=1 // pred_check_branch
      %105 = sbr.rel (0) target = $region57
    $region56: #{tpu_custom_call.1} parent=1 // pred_region
      _
    $region57: #{tpu_custom_call.1} parent=1 // pred_fallthru
      _
    // Predicated region
    $region58: #{tpu_custom_call.1} parent=1 // pred_check
      _
    $region59: #{tpu_custom_call.1} parent=1 // pred_check_branch
      %107 = sbr.rel (0) target = $region61
    $region60: #{tpu_custom_call.1} parent=1 // pred_region
      %108 = dma.done [#allocation5], 256
    $region61: #{tpu_custom_call.1} parent=1 // pred_fallthru
      _
    // Predicated region
    $region62: #{tpu_custom_call.1} parent=1 // pred_check
      _
    $region63: #{tpu_custom_call.1} parent=1 // pred_check_branch
      %110 = sbr.rel (0) target = $region65
    $region64: #{tpu_custom_call.1} parent=1 // pred_region
      %111 = dma.done [#allocation8], 256
    $region65: #{tpu_custom_call.1} parent=1 // pred_fallthru
      _
    // Predicated region
    $region66: #{tpu_custom_call.1} parent=1 // pred_check
      _
    $region67: #{tpu_custom_call.1} parent=1 // pred_check_branch
      %113 = sbr.rel (0) target = $region69
    $region68: #{tpu_custom_call.1} parent=1 // pred_region
      %114 = dma.done [#allocation8], 1024
    $region69: #{tpu_custom_call.1} parent=1 // pred_fallthru
      _
    // Predicated region
    $region70: #{tpu_custom_call.1} parent=1 // pred_check
      _
    $region71: #{tpu_custom_call.1} parent=1 // pred_check_branch
      %116 = sbr.rel (0) target = $region73
    $region72: #{tpu_custom_call.1} parent=1 // pred_region
      %117 = dma.done [#allocation11], 256
    $region73: #{tpu_custom_call.1} parent=1 // pred_fallthru
      _
    // Predicated region
    $region74: #{tpu_custom_call.1} parent=1 // pred_check
      _
    $region75: #{tpu_custom_call.1} parent=1 // pred_check_branch
      %119 = sbr.rel (0) target = $region77
    $region76: #{tpu_custom_call.1} parent=1 // pred_region
      %120 = dma.done [#allocation11], 256
    $region77: #{tpu_custom_call.1} parent=1 // pred_fallthru
      _
    %v122 = vld [vmem:[#allocation4] sm:$0xff]
    %v123 = vld [vmem:[#allocation4 + $0x8] sm:$0xff]
    %v124 = vld [vmem:[#allocation7] sm:$0xff]
    %v125 = vld [vmem:[#allocation7 + $0x8] sm:$0xff]
    %v126 = vld [vmem:[%s2] sm:$0x1]
    %v128 = vlaneseq
    %v129 = vshrl.u32 %v128, 7
    %v130 = vsub.s32 0, %v129
    %v131 = vrot.slane %v126, %v130
    %v133 = vmul.f32 %v122, %v131
    %v134 = vmul.f32 %v123, %v131
    %135 = vadd.xlane.f32.xlu0 %v133
    %v136 = vpop.xlane.xlu0 %135
    %137 = vadd.xlane.f32.xlu0 %v134
    %v138 = vpop.xlane.xlu0 %137
    %v139 = vld [vmem:[%s11] sm:$0x1]
    %v141 = vlaneseq
    %v142 = vshrl.u32 %v141, 7
    %v143 = vsub.s32 0, %v142
    %v144 = vrot.slane %v139, %v143
    %v146 = vmul.f32 %v122, %v144
    %v147 = vmul.f32 %v123, %v144
    %148 = vadd.xlane.f32.xlu0 %v146
    %v149 = vpop.xlane.xlu0 %148
    %150 = vadd.xlane.f32.xlu0 %v147
    %v151 = vpop.xlane.xlu0 %150
    %v152 = vld [vmem:[%s3] sm:$0x1]
    %v154 = vlaneseq
    %v155 = vshrl.u32 %v154, 7
    %v156 = vsub.s32 0, %v155
    %v157 = vrot.slane %v152, %v156
    %v159 = vmul.f32 %v124, %v157
    %v160 = vmul.f32 %v125, %v157
    %vm161 = vcmask 261120
    %v162 = vsel %vm161, %v159, 0.0
    %163 = vadd.xlane.f32.xlu0 %v162
    %v164 = vpop.xlane.xlu0 %163
    %v165 = vsel %vm161, %v160, 0.0
    %166 = vadd.xlane.f32.xlu0 %v165
    %v167 = vpop.xlane.xlu0 %166
    %v168 = vadd.f32 %v136, %v164
    %v169 = vadd.f32 %v138, %v167
    %s170 = sld [smem:[#allocation2]]
    %v171 = vstv %s170
    %v172 = vadd.f32 %v168, %v171
    %v173 = vadd.f32 %v169, %v171
    %v176 = vlaneseq
    %v177 = vand.u32 %v176, 127
    %v178 = vlaneseq
    %v179 = vshrl.u32 %v178, 7
    %v180 = vsub.s32 %v177, %v179
    %v181 = vrot.slane %v172, %v180
    %v182 = vlaneseq
    %v183 = vshrl.u32 %v182, 7
    %v184 = vsub.s32 %v177, %v183
    %v185 = vrot.slane %v173, %v184
    %vm186 = vcmask 1041409
    %v187 = vsel %vm186, %v185, %v181
    %vm189 = vcmask 58368
    %v190 = vsel %vm189, %v187, -inf
    %191 = vmax.xlane.f32.xlu0 %v190
    %v192 = vpop.xlane.xlu0 %191
    %v194 = vlaneseq
    %v195 = vshrl.u32 %v194, 7
    %v196 = vsub.s32 0, %v195
    %v197 = vrot.slane %v192, %v196
    %v198 = vlaneseq
    %v199 = vshrl.u32 %v198, 7
    %v200 = vsub.s32 1, %v199
    %v201 = vrot.slane %v192, %v200
    %v204 = vsub.f32 %v172, %v197
    %v205 = vsub.f32 %v173, %v201
    %v206 = vmul.f32 %v204, 1.442695
    %v207 = vpow.pop %v206
    %v208 = vmul.f32 %v205, 1.442695
    %v209 = vpow.pop %v208
    %212 = vset.pattern.permute.xlu0 0
    %213 = vperm.xlu0 %212, %v207
    %v214 = vpop.permute.xlu0 %213
    %215 = vset.pattern.permute.xlu0 0
    %216 = vperm.xlu0 %215, %v209
    %v217 = vpop.permute.xlu0 %216
    %v218 = vlaneseq
    %v219 = vshrl.u32 %v218, 7
    %v220 = vsub.s32 %v177, %v219
    %v221 = vrot.slane %v214, %v220
    %v222 = vlaneseq
    %v223 = vshrl.u32 %v222, 7
    %v224 = vsub.s32 %v177, %v223
    %v225 = vrot.slane %v217, %v224
    %v226 = vsel %vm186, %v225, %v221
    %v228 = vsel %vm189, %v226, 0.0
    %229 = vadd.xlane.f32.xlu0 %v228
    %v230 = vpop.xlane.xlu0 %229
    %v231 = vlog2.pop %v230
    %v232 = vmul.f32 %v231, 0.6931472
    %v234 = vlaneseq
    %v235 = vshrl.u32 %v234, 7
    %v236 = vsub.s32 0, %v235
    %v237 = vrot.slane %v232, %v236
    %v238 = vlaneseq
    %v239 = vshrl.u32 %v238, 7
    %v240 = vsub.s32 1, %v239
    %v241 = vrot.slane %v232, %v240
    %v244 = vsub.f32 %v204, %v237
    %v245 = vsub.f32 %v205, %v241
    %248 = vset.pattern.permute.xlu0 0
    %249 = vperm.xlu0 %248, %v244
    %v250 = vpop.permute.xlu0 %249
    %251 = vset.pattern.permute.xlu0 0
    %252 = vperm.xlu0 %251, %v245
    %v253 = vpop.permute.xlu0 %252
    %v254 = vlaneseq
    %v255 = vshrl.u32 %v254, 7
    %v256 = vsub.s32 %v177, %v255
    %v257 = vrot.slane %v250, %v256
    %v258 = vlaneseq
    %v259 = vshrl.u32 %v258, 7
    %v260 = vsub.s32 %v177, %v259
    %v261 = vrot.slane %v253, %v260
    %vm264 = vcmask 57344
    %265 = vst.msk [vmem:[#allocation13] sm:$0x1] %vm264, %v257
    %266 = vst.msk [vmem:[#allocation13 + $0x1] sm:$0x1] %vm264, %v261
    %v268 = vlaneseq
    %v269 = vshrl.u32 %v268, 7
    %v270 = vsub.s32 0, %v269
    %v271 = vrot.slane %v230, %v270
    %v272 = vlaneseq
    %v273 = vshrl.u32 %v272, 7
    %v274 = vsub.s32 1, %v273
    %v275 = vrot.slane %v230, %v274
    %v278 = vrcp.pop %v271
    %v279 = vmul.f32 %v207, %v278
    %v280 = vrcp.pop %v275
    %v281 = vmul.f32 %v209, %v280
    %283 = vset.pattern.permute.xlu0 0
    %284 = vperm.xlu0 %283, %v279
    %v285 = vpop.permute.xlu0 %284
    %288 = vset.pattern.permute.xlu0 0
    %289 = vperm.xlu0 %288, %v281
    %v290 = vpop.permute.xlu0 %289
    %v292 = vmul.f32 %v285, %v124
    %v293 = vmul.f32 %v290, %v125
    %v294 = vsel %vm161, %v292, 0.0
    %v295 = vrot.slane %v294, 4
    %v296 = vadd.f32 %v294, %v295
    %v297 = vrot.slane %v296, 2
    %v298 = vadd.f32 %v296, %v297
    %v299 = vrot.slane %v298, 1
    %v300 = vadd.f32 %v298, %v299
    %v301 = vsel %vm161, %v293, 0.0
    %v302 = vrot.slane %v301, 4
    %v303 = vadd.f32 %v301, %v302
    %v304 = vrot.slane %v303, 2
    %v305 = vadd.f32 %v303, %v304
    %v306 = vrot.slane %v305, 1
    %v307 = vadd.f32 %v305, %v306
    %v308 = vmul.f32 %v124, %v300
    %v309 = vmul.f32 %v125, %v307
    %v310 = vpack.c.bf16 %v123, %v122
    %v311 = vpack.c.bf16 %v125, %v124
    %v312 = vpack.c.bf16 %v309, %v308
    %v313 = vld [vmem:[#allocation9] sm:$0xf]
    %v314 = vld [vmem:[#allocation9 + $0x4] sm:$0xf]
    %v315 = vld [vmem:[#allocation9 + $0x8] sm:$0xf]
    %v316 = vld [vmem:[#allocation9 + $0xc] sm:$0xf]
    %v317 = vld [vmem:[#allocation9 + $0x10] sm:$0xf]
    %v318 = vld [vmem:[#allocation9 + $0x14] sm:$0xf]
    %v319 = vld [vmem:[#allocation9 + $0x18] sm:$0xf]
    %v320 = vld [vmem:[#allocation9 + $0x1c] sm:$0xf]
    %v321 = vld [vmem:[#allocation9 + $0x20] sm:$0xf]
    %v322 = vld [vmem:[#allocation9 + $0x24] sm:$0xf]
    %v323 = vld [vmem:[#allocation9 + $0x28] sm:$0xf]
    %v324 = vld [vmem:[#allocation9 + $0x2c] sm:$0xf]
    %v325 = vld [vmem:[#allocation9 + $0x30] sm:$0xf]
    %v326 = vld [vmem:[#allocation9 + $0x34] sm:$0xf]
    %v327 = vld [vmem:[#allocation9 + $0x38] sm:$0xf]
    %v328 = vld [vmem:[#allocation9 + $0x3c] sm:$0xf]
    %v329 = vld [vmem:[%s6] sm:$0xf]
    %v330 = vld [vmem:[%s6 + $0x4] sm:$0xf]
    %v331 = vld [vmem:[%s6 + $0x8] sm:$0xf]
    %v332 = vld [vmem:[%s6 + $0xc] sm:$0xf]
    %v337 = vunpack.c.l.b16 %v329
    %v338 = vunpack.c.l.b16 %v330
    %v339 = vunpack.c.l.b16 %v331
    %v340 = vunpack.c.l.b16 %v332
    %v341 = vpack.c.b16 %v338, %v337
    %v342 = vpack.c.b16 %v340, %v339
    %v346 = vsel %vm161, %v311, 0
    %348 = vmatprep.subr.bf16.mxu0 0
    %349 = vmatpush1.bf16.msra.mxu0 %v341
    %350 = vmatprep.subr.bf16.mxu0 0
    %351 = vmatpush1.bf16.msra.mxu0 %v342
    %352 = vmatprep.subr.bf16.mxu0 0
    %353 = vmatpush1.bf16.msra.mxu0 0
    %354 = vmatprep.subr.bf16.mxu0 0
    %355 = vmatpush1.bf16.msra.mxu0 0
    %356 = vmatprep.subr.bf16.mxu0 0
    %357 = vmatpush1.bf16.msra.mxu0 0
    %358 = vmatprep.subr.bf16.mxu0 0
    %359 = vmatpush1.bf16.msra.mxu0 0
    %360 = vmatprep.subr.bf16.mxu0 0
    %361 = vmatpush1.bf16.msra.mxu0 0
    %362 = vmatprep.subr.bf16.mxu0 0
    %363 = vmatpush1.bf16.msra.mxu0 0
    %364 = vmatprep.subr.bf16.mxu0 0
    %365 = vmatpush1.bf16.msra.mxu0 0
    %366 = vmatprep.subr.bf16.mxu0 0
    %367 = vmatpush1.bf16.msra.mxu0 0
    %368 = vmatprep.subr.bf16.mxu0 0
    %369 = vmatpush1.bf16.msra.mxu0 0
    %370 = vmatprep.subr.bf16.mxu0 0
    %371 = vmatpush1.bf16.msra.mxu0 0
    %372 = vmatprep.subr.bf16.mxu0 0
    %373 = vmatpush1.bf16.msra.mxu0 0
    %374 = vmatprep.subr.bf16.mxu0 0
    %375 = vmatpush1.bf16.msra.mxu0 0
    %376 = vmatprep.subr.bf16.mxu0 0
    %377 = vmatpush1.bf16.msra.mxu0 0
    %378 = vmatprep.subr.bf16.mxu0 0
    %379 = vmatpush1.bf16.msra.mxu0 0
    %380 = vmatprep.mubr.bf16.mxu0 0
    %381 = vmatmul.mubr.bf16.gmra.mrb[0].mxu0 %v346
    %v382 = vpop.f32.mrb[0].mxu0
    %v383 = vadd.f32 0.0, %v382
    %v384 = vpop.f32.mrb[0].mxu0
    %v385 = vpop.f32.mrb[0].mxu0
    %v386 = vadd.f32 0.0, %v385
    %v387 = vpop.f32.mrb[0].mxu0
    %388 = vdwg.mxu0
    %v405 = vunpack.c.l.b16 %v313
    %v406 = vunpack.c.l.b16 %v314
    %v407 = vunpack.c.l.b16 %v315
    %v408 = vunpack.c.l.b16 %v316
    %v409 = vunpack.c.l.b16 %v317
    %v410 = vunpack.c.l.b16 %v318
    %v411 = vunpack.c.l.b16 %v319
    %v412 = vunpack.c.l.b16 %v320
    %v413 = vunpack.c.l.b16 %v321
    %v414 = vunpack.c.l.b16 %v322
    %v415 = vunpack.c.l.b16 %v323
    %v416 = vunpack.c.l.b16 %v324
    %v417 = vunpack.c.l.b16 %v325
    %v418 = vunpack.c.l.b16 %v326
    %v419 = vunpack.c.l.b16 %v327
    %v420 = vunpack.c.l.b16 %v328
    %v421 = vpack.c.b16 %v406, %v405
    %v422 = vpack.c.b16 %v408, %v407
    %v423 = vpack.c.b16 %v410, %v409
    %v424 = vpack.c.b16 %v412, %v411
    %v425 = vpack.c.b16 %v414, %v413
    %v426 = vpack.c.b16 %v416, %v415
    %v427 = vpack.c.b16 %v418, %v417
    %v428 = vpack.c.b16 %v420, %v419
    %437 = vmatprep.subr.bf16.mxu0 0
    %438 = vmatpush1.bf16.msra.mxu0 %v421
    %439 = vmatprep.subr.bf16.mxu0 0
    %440 = vmatpush1.bf16.msra.mxu0 %v422
    %441 = vmatprep.subr.bf16.mxu0 0
    %442 = vmatpush1.bf16.msra.mxu0 %v423
    %443 = vmatprep.subr.bf16.mxu0 0
    %444 = vmatpush1.bf16.msra.mxu0 %v424
    %445 = vmatprep.subr.bf16.mxu0 0
    %446 = vmatpush1.bf16.msra.mxu0 %v425
    %447 = vmatprep.subr.bf16.mxu0 0
    %448 = vmatpush1.bf16.msra.mxu0 %v426
    %449 = vmatprep.subr.bf16.mxu0 0
    %450 = vmatpush1.bf16.msra.mxu0 %v427
    %451 = vmatprep.subr.bf16.mxu0 0
    %452 = vmatpush1.bf16.msra.mxu0 %v428
    %453 = vmatprep.subr.bf16.mxu0 0
    %454 = vmatpush1.bf16.msra.mxu0 0
    %455 = vmatprep.subr.bf16.mxu0 0
    %456 = vmatpush1.bf16.msra.mxu0 0
    %457 = vmatprep.subr.bf16.mxu0 0
    %458 = vmatpush1.bf16.msra.mxu0 0
    %459 = vmatprep.subr.bf16.mxu0 0
    %460 = vmatpush1.bf16.msra.mxu0 0
    %461 = vmatprep.subr.bf16.mxu0 0
    %462 = vmatpush1.bf16.msra.mxu0 0
    %463 = vmatprep.subr.bf16.mxu0 0
    %464 = vmatpush1.bf16.msra.mxu0 0
    %465 = vmatprep.subr.bf16.mxu0 0
    %466 = vmatpush1.bf16.msra.mxu0 0
    %467 = vmatprep.subr.bf16.mxu0 0
    %468 = vmatpush1.bf16.msra.mxu0 0
    %469 = vmatprep.mubr.bf16.mxu0 0
    %470 = vmatmul.mubr.bf16.gmra.mrb[0].mxu0 %v310
    %v471 = vpop.f32.mrb[0].mxu0
    %v472 = vadd.f32 %v383, %v471
    %v473 = vpop.f32.mrb[0].mxu0
    %v474 = vpop.f32.mrb[0].mxu0
    %v475 = vadd.f32 %v386, %v474
    %v476 = vpop.f32.mrb[0].mxu0
    %477 = vdwg.mxu0
    %v478 = vld [vmem:[#allocation10] sm:$0xf]
    %v479 = vld [vmem:[#allocation10 + $0x4] sm:$0xf]
    %v480 = vld [vmem:[#allocation10 + $0x8] sm:$0xf]
    %v481 = vld [vmem:[#allocation10 + $0xc] sm:$0xf]
    %v486 = vunpack.c.l.b16 %v478
    %v487 = vunpack.c.l.b16 %v479
    %v488 = vunpack.c.l.b16 %v480
    %v489 = vunpack.c.l.b16 %v481
    %v490 = vpack.c.b16 %v487, %v486
    %v491 = vpack.c.b16 %v489, %v488
    %v495 = vsel %vm161, %v312, 0
    %497 = vmatprep.subr.bf16.mxu0 0
    %498 = vmatpush1.bf16.msra.mxu0 %v490
    %499 = vmatprep.subr.bf16.mxu0 0
    %500 = vmatpush1.bf16.msra.mxu0 %v491
    %501 = vmatprep.subr.bf16.mxu0 0
    %502 = vmatpush1.bf16.msra.mxu0 0
    %503 = vmatprep.subr.bf16.mxu0 0
    %504 = vmatpush1.bf16.msra.mxu0 0
    %505 = vmatprep.subr.bf16.mxu0 0
    %506 = vmatpush1.bf16.msra.mxu0 0
    %507 = vmatprep.subr.bf16.mxu0 0
    %508 = vmatpush1.bf16.msra.mxu0 0
    %509 = vmatprep.subr.bf16.mxu0 0
    %510 = vmatpush1.bf16.msra.mxu0 0
    %511 = vmatprep.subr.bf16.mxu0 0
    %512 = vmatpush1.bf16.msra.mxu0 0
    %513 = vmatprep.subr.bf16.mxu0 0
    %514 = vmatpush1.bf16.msra.mxu0 0
    %515 = vmatprep.subr.bf16.mxu0 0
    %516 = vmatpush1.bf16.msra.mxu0 0
    %517 = vmatprep.subr.bf16.mxu0 0
    %518 = vmatpush1.bf16.msra.mxu0 0
    %519 = vmatprep.subr.bf16.mxu0 0
    %520 = vmatpush1.bf16.msra.mxu0 0
    %521 = vmatprep.subr.bf16.mxu0 0
    %522 = vmatpush1.bf16.msra.mxu0 0
    %523 = vmatprep.subr.bf16.mxu0 0
    %524 = vmatpush1.bf16.msra.mxu0 0
    %525 = vmatprep.subr.bf16.mxu0 0
    %526 = vmatpush1.bf16.msra.mxu0 0
    %527 = vmatprep.subr.bf16.mxu0 0
    %528 = vmatpush1.bf16.msra.mxu0 0
    %529 = vmatprep.mubr.bf16.mxu0 0
    %530 = vmatmul.mubr.bf16.gmra.mrb[0].mxu0 %v495
    %v531 = vpop.f32.mrb[0].mxu0
    %v532 = vadd.f32 0.0, %v531
    %v533 = vpop.f32.mrb[0].mxu0
    %v534 = vpop.f32.mrb[0].mxu0
    %v535 = vadd.f32 0.0, %v534
    %v536 = vpop.f32.mrb[0].mxu0
    %537 = vdwg.mxu0
    %v538 = vadd.f32 %v472, %v532
    %v539 = vadd.f32 %v475, %v535
    %v540 = vpack.c.bf16 %v300, %v300
    %v541 = vpack.c.bf16 %v307, %v307
    %v542 = vld [vmem:[%s8] sm:$0xf]
    %v543 = vld [vmem:[%s8 + $0x4] sm:$0xf]
    %v544 = vld [vmem:[%s8 + $0x8] sm:$0xf]
    %v545 = vld [vmem:[%s8 + $0xc] sm:$0xf]
    %v546 = vld [vmem:[%s10] sm:$0x1]
    %v548 = vlaneseq
    %v549 = vshrl.u32 %v548, 7
    %v550 = vsub.s32 0, %v549
    %v551 = vrot.slane %v546, %v550
    %v555 = vunpack.c.l.b16 %v540
    %v556 = vunpack.c.l.b16 %v541
    %v557 = vsel %vm186, %v556, %v555
    %v558 = vpack.c.b16 %v557, %v557
    %v563 = vunpack.c.l.b16 %v542
    %v564 = vunpack.c.l.b16 %v543
    %v565 = vunpack.c.l.b16 %v544
    %v566 = vunpack.c.l.b16 %v545
    %v567 = vpack.c.b16 %v564, %v563
    %v568 = vpack.c.b16 %v566, %v565
    %v572 = vsel %vm161, %v558, 0
    %574 = vmatprep.subr.bf16.mxu0 0
    %575 = vmatpush1.bf16.msra.mxu0 %v567
    %576 = vmatprep.subr.bf16.mxu0 0
    %577 = vmatpush1.bf16.msra.mxu0 %v568
    %578 = vmatprep.subr.bf16.mxu0 0
    %579 = vmatpush1.bf16.msra.mxu0 0
    %580 = vmatprep.subr.bf16.mxu0 0
    %581 = vmatpush1.bf16.msra.mxu0 0
    %582 = vmatprep.subr.bf16.mxu0 0
    %583 = vmatpush1.bf16.msra.mxu0 0
    %584 = vmatprep.subr.bf16.mxu0 0
    %585 = vmatpush1.bf16.msra.mxu0 0
    %586 = vmatprep.subr.bf16.mxu0 0
    %587 = vmatpush1.bf16.msra.mxu0 0
    %588 = vmatprep.subr.bf16.mxu0 0
    %589 = vmatpush1.bf16.msra.mxu0 0
    %590 = vmatprep.subr.bf16.mxu0 0
    %591 = vmatpush1.bf16.msra.mxu0 0
    %592 = vmatprep.subr.bf16.mxu0 0
    %593 = vmatpush1.bf16.msra.mxu0 0
    %594 = vmatprep.subr.bf16.mxu0 0
    %595 = vmatpush1.bf16.msra.mxu0 0
    %596 = vmatprep.subr.bf16.mxu0 0
    %597 = vmatpush1.bf16.msra.mxu0 0
    %598 = vmatprep.subr.bf16.mxu0 0
    %599 = vmatpush1.bf16.msra.mxu0 0
    %600 = vmatprep.subr.bf16.mxu0 0
    %601 = vmatpush1.bf16.msra.mxu0 0
    %602 = vmatprep.subr.bf16.mxu0 0
    %603 = vmatpush1.bf16.msra.mxu0 0
    %604 = vmatprep.subr.bf16.mxu0 0
    %605 = vmatpush1.bf16.msra.mxu0 0
    %606 = vmatprep.mubr.bf16.mxu0 0
    %607 = vmatmul.mubr.bf16.gmra.mrb[0].mxu0 %v572
    %v608 = vpop.f32.mrb[0].mxu0
    %v609 = vadd.f32 %v551, %v608
    %v610 = vpop.f32.mrb[0].mxu0
    %v611 = vpop.f32.mrb[0].mxu0
    %v612 = vpop.f32.mrb[0].mxu0
    %613 = vdwg.mxu0
    %v616 = vunpack.c.l.s4 1966171168
    %v617 = vunpack.c.0.s8 %v616
    %v618 = vlaneseq
    %v619 = vshrl.u32 %v618, 7
    %v620 = vsub.s32 %v617, %v619
    %v621 = vrot.slane %v609, %v620
    %v622 = vcombine.high %v621, %v621
    %v624 = vunpack.c.l.s4 1966171168
    %v625 = vunpack.c.0.s8 %v624
    %v626 = vlaneseq
    %v627 = vshrl.u32 %v626, 7
    %v628 = vsub.s32 %v625, %v627
    %v629 = vrot.slane %v621, %v628
    %v631 = vunpack.c.l.s4 1966171168
    %v632 = vunpack.c.0.s8 %v631
    %v633 = vlaneseq
    %v634 = vshrl.u32 %v633, 7
    %v635 = vsub.s32 %v632, %v634
    %v636 = vrot.slane %v622, %v635
    %v637 = vlaneseq
    %v638 = vshrl.u32 %v637, 7
    %v639 = vsub.s32 0, %v638
    %v640 = vrot.slane %v629, %v639
    %v641 = vlaneseq
    %v642 = vshrl.u32 %v641, 7
    %v643 = vsub.s32 0, %v642
    %v644 = vrot.slane %v636, %v643
    %v647 = vadd.f32 %v538, %v640
    %v648 = vadd.f32 %v539, %v644
    %v649 = vld [vmem:[#allocation12] sm:$0xf]
    %v650 = vld [vmem:[#allocation12 + $0x4] sm:$0xf]
    %v651 = vld [vmem:[#allocation12 + $0x8] sm:$0xf]
    %v652 = vld [vmem:[#allocation12 + $0xc] sm:$0xf]
    %v653 = vld [vmem:[%s12] sm:$0x1]
    %v658 = vunpack.c.l.b16 %v649
    %v659 = vunpack.c.l.b16 %v650
    %v660 = vunpack.c.l.b16 %v651
    %v661 = vunpack.c.l.b16 %v652
    %v662 = vpack.c.b16 %v659, %v658
    %v663 = vpack.c.b16 %v661, %v660
    %v667 = vsel %vm161, 0, 0
    %669 = vmatprep.subr.bf16.mxu0 0
    %670 = vmatpush1.bf16.msra.mxu0 %v662
    %671 = vmatprep.subr.bf16.mxu0 0
    %672 = vmatpush1.bf16.msra.mxu0 %v663
    %673 = vmatprep.subr.bf16.mxu0 0
    %674 = vmatpush1.bf16.msra.mxu0 0
    %675 = vmatprep.subr.bf16.mxu0 0
    %676 = vmatpush1.bf16.msra.mxu0 0
    %677 = vmatprep.subr.bf16.mxu0 0
    %678 = vmatpush1.bf16.msra.mxu0 0
    %679 = vmatprep.subr.bf16.mxu0 0
    %680 = vmatpush1.bf16.msra.mxu0 0
    %681 = vmatprep.subr.bf16.mxu0 0
    %682 = vmatpush1.bf16.msra.mxu0 0
    %683 = vmatprep.subr.bf16.mxu0 0
    %684 = vmatpush1.bf16.msra.mxu0 0
    %685 = vmatprep.subr.bf16.mxu0 0
    %686 = vmatpush1.bf16.msra.mxu0 0
    %687 = vmatprep.subr.bf16.mxu0 0
    %688 = vmatpush1.bf16.msra.mxu0 0
    %689 = vmatprep.subr.bf16.mxu0 0
    %690 = vmatpush1.bf16.msra.mxu0 0
    %691 = vmatprep.subr.bf16.mxu0 0
    %692 = vmatpush1.bf16.msra.mxu0 0
    %693 = vmatprep.subr.bf16.mxu0 0
    %694 = vmatpush1.bf16.msra.mxu0 0
    %695 = vmatprep.subr.bf16.mxu0 0
    %696 = vmatpush1.bf16.msra.mxu0 0
    %697 = vmatprep.subr.bf16.mxu0 0
    %698 = vmatpush1.bf16.msra.mxu0 0
    %699 = vmatprep.subr.bf16.mxu0 0
    %700 = vmatpush1.bf16.msra.mxu0 0
    %701 = vmatprep.mubr.bf16.mxu0 0
    %702 = vmatmul.mubr.bf16.gmra.mrb[0].mxu0 %v667
    %v703 = vpop.f32.mrb[0].mxu0
    %v704 = vadd.f32 0.0, %v703
    %v705 = vpop.f32.mrb[0].mxu0
    %v706 = vpop.f32.mrb[0].mxu0
    %v707 = vpop.f32.mrb[0].mxu0
    %708 = vdwg.mxu0
    %v710 = vrot.slane %v704, 1
    %v713 = vadd.f32 %v647, %v704
    %v714 = vadd.f32 %v648, %v710
    %v715 = vxor.u32 %v713, 2147483648
    %v716 = vxor.u32 %v714, 2147483648
    %v717 = vmul.f32 %v715, 1.442695
    %v718 = vpow.pop %v717
    %v719 = vmul.f32 %v716, 1.442695
    %v720 = vpow.pop %v719
    %v721 = vadd.f32 %v718, 1.0
    %v722 = vadd.f32 %v720, 1.0
    %v723 = vrcp.pop %v721
    %v724 = vmul.f32 1.0, %v723
    %v725 = vrcp.pop %v722
    %v726 = vmul.f32 1.0, %v725
    %v727 = vtanh.pop %v713
    %v728 = vtanh.pop %v714
    %v729 = vmul.f32 %v724, 0.0
    %v730 = vmul.f32 %v726, 0.0
    %733 = vrot.lane.b32.xlu0 %v727, 32
    %v734 = vpop.permute.xlu0 %733
    %735 = vrot.lane.b32.xlu0 %v728, 32
    %v736 = vpop.permute.xlu0 %735
    %v739 = vmul.f32 %v724, %v734
    %v740 = vmul.f32 %v726, %v736
    %743 = vrot.lane.b32.xlu0 %v739, 32
    %v744 = vpop.permute.xlu0 %743
    %745 = vrot.lane.b32.xlu0 %v740, 32
    %v746 = vpop.permute.xlu0 %745
    %v749 = vadd.f32 %v729, %v744
    %v750 = vadd.f32 %v730, %v746
    %v751 = vtanh.pop %v749
    %v752 = vtanh.pop %v750
    %755 = vrot.lane.b32.xlu0 %v751, 32
    %v756 = vpop.permute.xlu0 %755
    %757 = vrot.lane.b32.xlu0 %v752, 32
    %v758 = vpop.permute.xlu0 %757
    %v761 = vmul.f32 %v724, %v756
    %v762 = vmul.f32 %v726, %v758
    %v764 = vlaneseq
    %v765 = vshrl.u32 %v764, 7
    %v766 = vsub.s32 0, %v765
    %v767 = vrot.slane %v653, %v766
    %768 = vrot.lane.b32.xlu0 %v767, 64
    %v769 = vpop.permute.xlu0 %768
    %v771 = vmul.f32 %v761, %v769
    %v772 = vmul.f32 %v762, %v769
    %v775 = vrot.slane %v772, 7
    %v776 = vsel %vm186, %v775, %v771
    %777 = vrot.lane.b32.xlu0 %v776, 64
    %v778 = vpop.permute.xlu0 %777
    %vm780 = vcmask 254976
    %v781 = vsel %vm780, %v778, 0.0
    %782 = vadd.xlane.f32.xlu0 %v781
    %v783 = vpop.xlane.xlu0 %782
    %vm784 = vcmp.eq.s32.totalorder %v177, 0
    %v785 = vsel %vm784, %v783, 0.0
    %v786 = vadd.f32 %v785, 0.0
    %v787 = vpack.c.bf16 %v761, %v761
    %v788 = vpack.c.bf16 %v762, %v762
    %v791 = vunpack.c.l.b16 %v787
    %v792 = vunpack.c.l.b16 %v788
    %v793 = vrot.slane %v792, 7
    %v794 = vsel %vm186, %v793, %v791
    %v795 = vpack.c.b16 %v794, %v794
    %796 = vrot.lane.b32.xlu0 %v795, 64
    %v797 = vpop.permute.xlu0 %796
    %v799 = vsel %vm161, %v797, 0
    %801 = vmatprep.subr.bf16.mxu0 0
    %802 = vmatpush1.bf16.msra.mxu0 %v662
    %803 = vmatprep.subr.bf16.mxu0 0
    %804 = vmatpush1.bf16.msra.mxu0 %v663
    %805 = vmatprep.subr.bf16.mxu0 0
    %806 = vmatpush1.bf16.msra.mxu0 0
    %807 = vmatprep.subr.bf16.mxu0 0
    %808 = vmatpush1.bf16.msra.mxu0 0
    %809 = vmatprep.subr.bf16.mxu0 0
    %810 = vmatpush1.bf16.msra.mxu0 0
    %811 = vmatprep.subr.bf16.mxu0 0
    %812 = vmatpush1.bf16.msra.mxu0 0
    %813 = vmatprep.subr.bf16.mxu0 0
    %814 = vmatpush1.bf16.msra.mxu0 0
    %815 = vmatprep.subr.bf16.mxu0 0
    %816 = vmatpush1.bf16.msra.mxu0 0
    %817 = vmatprep.subr.bf16.mxu0 0
    %818 = vmatpush1.bf16.msra.mxu0 0
    %819 = vmatprep.subr.bf16.mxu0 0
    %820 = vmatpush1.bf16.msra.mxu0 0
    %821 = vmatprep.subr.bf16.mxu0 0
    %822 = vmatpush1.bf16.msra.mxu0 0
    %823 = vmatprep.subr.bf16.mxu0 0
    %824 = vmatpush1.bf16.msra.mxu0 0
    %825 = vmatprep.subr.bf16.mxu0 0
    %826 = vmatpush1.bf16.msra.mxu0 0
    %827 = vmatprep.subr.bf16.mxu0 0
    %828 = vmatpush1.bf16.msra.mxu0 0
    %829 = vmatprep.subr.bf16.mxu0 0
    %830 = vmatpush1.bf16.msra.mxu0 0
    %831 = vmatprep.subr.bf16.mxu0 0
    %832 = vmatpush1.bf16.msra.mxu0 0
    %833 = vmatprep.mubr.bf16.mxu0 0
    %834 = vmatmul.mubr.bf16.gmra.mrb[0].mxu0 %v799
    %v835 = vpop.f32.mrb[0].mxu0
    %v836 = vadd.f32 0.0, %v835
    %v837 = vpop.f32.mrb[0].mxu0
    %v838 = vpop.f32.mrb[0].mxu0
    %v839 = vpop.f32.mrb[0].mxu0
    %840 = vdwg.mxu0
    %v842 = vrot.slane %v836, 7
    %v845 = vadd.f32 %v647, %v842
    %v846 = vadd.f32 %v648, %v836
    %v847 = vxor.u32 %v845, 2147483648
    %v848 = vxor.u32 %v846, 2147483648
    %v849 = vmul.f32 %v847, 1.442695
    %v850 = vpow.pop %v849
    %v851 = vmul.f32 %v848, 1.442695
    %v852 = vpow.pop %v851
    %v853 = vadd.f32 %v850, 1.0
    %v854 = vadd.f32 %v852, 1.0
    %v855 = vrcp.pop %v853
    %v856 = vmul.f32 1.0, %v855
    %v857 = vrcp.pop %v854
    %v858 = vmul.f32 1.0, %v857
    %v859 = vtanh.pop %v845
    %v860 = vtanh.pop %v846
    %v863 = vrot.slane %v749, 7
    %v864 = vrot.slane %v750, 7
    %v867 = vmul.f32 %v856, %v863
    %v868 = vmul.f32 %v858, %v864
    %871 = vrot.lane.b32.xlu0 %v859, 32
    %v872 = vpop.permute.xlu0 %871
    %873 = vrot.lane.b32.xlu0 %v860, 32
    %v874 = vpop.permute.xlu0 %873
    %v877 = vmul.f32 %v856, %v872
    %v878 = vmul.f32 %v858, %v874
    %881 = vrot.lane.b32.xlu0 %v877, 32
    %v882 = vpop.permute.xlu0 %881
    %883 = vrot.lane.b32.xlu0 %v878, 32
    %v884 = vpop.permute.xlu0 %883
    %v887 = vadd.f32 %v867, %v882
    %v888 = vadd.f32 %v868, %v884
    %v889 = vtanh.pop %v887
    %v890 = vtanh.pop %v888
    %893 = vrot.lane.b32.xlu0 %v889, 32
    %v894 = vpop.permute.xlu0 %893
    %895 = vrot.lane.b32.xlu0 %v890, 32
    %v896 = vpop.permute.xlu0 %895
    %v899 = vmul.f32 %v856, %v894
    %v900 = vmul.f32 %v858, %v896
    %v901 = vmul.f32 %v899, %v769
    %v902 = vmul.f32 %v900, %v769
    %v905 = vrot.slane %v902, 7
    %vm906 = vcmask 1042434
    %v907 = vsel %vm906, %v905, %v901
    %908 = vrot.lane.b32.xlu0 %v907, 64
    %v909 = vpop.permute.xlu0 %908
    %vm911 = vcmask 256001
    %v912 = vsel %vm911, %v909, 0.0
    %913 = vadd.xlane.f32.xlu0 %v912
    %v914 = vpop.xlane.xlu0 %913
    %vm915 = vcmp.eq.s32.totalorder %v177, 1
    %v916 = vsel %vm915, %v914, 0.0
    %v918 = vrot.slane %v916, 1
    %v920 = vadd.f32 %v786, %v918
    %v921 = vpack.c.bf16 %v899, %v899
    %v922 = vpack.c.bf16 %v900, %v900
    %v925 = vunpack.c.l.b16 %v921
    %v926 = vunpack.c.l.b16 %v922
    %v927 = vrot.slane %v925, 1
    %v928 = vsel %vm186, %v926, %v927
    %v929 = vpack.c.b16 %v928, %v928
    %930 = vrot.lane.b32.xlu0 %v929, 64
    %v931 = vpop.permute.xlu0 %930
    %v933 = vsel %vm161, %v931, 0
    %935 = vmatprep.subr.bf16.mxu0 0
    %936 = vmatpush1.bf16.msra.mxu0 %v662
    %937 = vmatprep.subr.bf16.mxu0 0
    %938 = vmatpush1.bf16.msra.mxu0 %v663
    %939 = vmatprep.subr.bf16.mxu0 0
    %940 = vmatpush1.bf16.msra.mxu0 0
    %941 = vmatprep.subr.bf16.mxu0 0
    %942 = vmatpush1.bf16.msra.mxu0 0
    %943 = vmatprep.subr.bf16.mxu0 0
    %944 = vmatpush1.bf16.msra.mxu0 0
    %945 = vmatprep.subr.bf16.mxu0 0
    %946 = vmatpush1.bf16.msra.mxu0 0
    %947 = vmatprep.subr.bf16.mxu0 0
    %948 = vmatpush1.bf16.msra.mxu0 0
    %949 = vmatprep.subr.bf16.mxu0 0
    %950 = vmatpush1.bf16.msra.mxu0 0
    %951 = vmatprep.subr.bf16.mxu0 0
    %952 = vmatpush1.bf16.msra.mxu0 0
    %953 = vmatprep.subr.bf16.mxu0 0
    %954 = vmatpush1.bf16.msra.mxu0 0
    %955 = vmatprep.subr.bf16.mxu0 0
    %956 = vmatpush1.bf16.msra.mxu0 0
    %957 = vmatprep.subr.bf16.mxu0 0
    %958 = vmatpush1.bf16.msra.mxu0 0
    %959 = vmatprep.subr.bf16.mxu0 0
    %960 = vmatpush1.bf16.msra.mxu0 0
    %961 = vmatprep.subr.bf16.mxu0 0
    %962 = vmatpush1.bf16.msra.mxu0 0
    %963 = vmatprep.subr.bf16.mxu0 0
    %964 = vmatpush1.bf16.msra.mxu0 0
    %965 = vmatprep.subr.bf16.mxu0 0
    %966 = vmatpush1.bf16.msra.mxu0 0
    %967 = vmatprep.mubr.bf16.mxu0 0
    %968 = vmatmul.mubr.bf16.gmra.mrb[0].mxu0 %v933
    %v969 = vpop.f32.mrb[0].mxu0
    %v970 = vadd.f32 0.0, %v969
    %v971 = vpop.f32.mrb[0].mxu0
    %v972 = vpop.f32.mrb[0].mxu0
    %v973 = vpop.f32.mrb[0].mxu0
    %974 = vdwg.mxu0
    %v976 = vrot.slane %v970, 6
    %v977 = vrot.slane %v970, 7
    %v980 = vadd.f32 %v647, %v976
    %v981 = vadd.f32 %v648, %v977
    %v982 = vxor.u32 %v980, 2147483648
    %v983 = vxor.u32 %v981, 2147483648
    %v984 = vmul.f32 %v982, 1.442695
    %v985 = vpow.pop %v984
    %v986 = vmul.f32 %v983, 1.442695
    %v987 = vpow.pop %v986
    %v988 = vadd.f32 %v985, 1.0
    %v989 = vadd.f32 %v987, 1.0
    %v990 = vrcp.pop %v988
    %v991 = vmul.f32 1.0, %v990
    %v992 = vrcp.pop %v989
    %v993 = vmul.f32 1.0, %v992
    %v994 = vtanh.pop %v980
    %v995 = vtanh.pop %v981
    %v998 = vrot.slane %v887, 7
    %v999 = vrot.slane %v888, 7
    %v1002 = vmul.f32 %v991, %v998
    %v1003 = vmul.f32 %v993, %v999
    %1006 = vrot.lane.b32.xlu0 %v994, 32
    %v1007 = vpop.permute.xlu0 %1006
    %1008 = vrot.lane.b32.xlu0 %v995, 32
    %v1009 = vpop.permute.xlu0 %1008
    %v1012 = vmul.f32 %v991, %v1007
    %v1013 = vmul.f32 %v993, %v1009
    %1016 = vrot.lane.b32.xlu0 %v1012, 32
    %v1017 = vpop.permute.xlu0 %1016
    %1018 = vrot.lane.b32.xlu0 %v1013, 32
    %v1019 = vpop.permute.xlu0 %1018
    %v1022 = vadd.f32 %v1002, %v1017
    %v1023 = vadd.f32 %v1003, %v1019
    %v1024 = vtanh.pop %v1022
    %v1025 = vtanh.pop %v1023
    %1028 = vrot.lane.b32.xlu0 %v1024, 32
    %v1029 = vpop.permute.xlu0 %1028
    %1030 = vrot.lane.b32.xlu0 %v1025, 32
    %v1031 = vpop.permute.xlu0 %1030
    %v1034 = vmul.f32 %v991, %v1029
    %v1035 = vmul.f32 %v993, %v1031
    %v1036 = vmul.f32 %v1034, %v769
    %v1037 = vmul.f32 %v1035, %v769
    %v1040 = vrot.slane %v1037, 7
    %vm1041 = vcmask 1043459
    %v1042 = vsel %vm1041, %v1040, %v1036
    %1043 = vrot.lane.b32.xlu0 %v1042, 64
    %v1044 = vpop.permute.xlu0 %1043
    %vm1046 = vcmask 257026
    %v1047 = vsel %vm1046, %v1044, 0.0
    %1048 = vadd.xlane.f32.xlu0 %v1047
    %v1049 = vpop.xlane.xlu0 %1048
    %vm1050 = vcmp.eq.s32.totalorder %v177, 2
    %v1051 = vsel %vm1050, %v1049, 0.0
    %v1053 = vrot.slane %v1051, 2
    %v1055 = vadd.f32 %v920, %v1053
    %v1056 = vpack.c.bf16 %v1034, %v1034
    %v1057 = vpack.c.bf16 %v1035, %v1035
    %v1060 = vunpack.c.l.b16 %v1056
    %v1061 = vunpack.c.l.b16 %v1057
    %v1062 = vrot.slane %v1060, 2
    %v1063 = vrot.slane %v1061, 1
    %v1064 = vsel %vm186, %v1063, %v1062
    %v1065 = vpack.c.b16 %v1064, %v1064
    %1066 = vrot.lane.b32.xlu0 %v1065, 64
    %v1067 = vpop.permute.xlu0 %1066
    %v1069 = vsel %vm161, %v1067, 0
    %1071 = vmatprep.subr.bf16.mxu0 0
    %1072 = vmatpush1.bf16.msra.mxu0 %v662
    %1073 = vmatprep.subr.bf16.mxu0 0
    %1074 = vmatpush1.bf16.msra.mxu0 %v663
    %1075 = vmatprep.subr.bf16.mxu0 0
    %1076 = vmatpush1.bf16.msra.mxu0 0
    %1077 = vmatprep.subr.bf16.mxu0 0
    %1078 = vmatpush1.bf16.msra.mxu0 0
    %1079 = vmatprep.subr.bf16.mxu0 0
    %1080 = vmatpush1.bf16.msra.mxu0 0
    %1081 = vmatprep.subr.bf16.mxu0 0
    %1082 = vmatpush1.bf16.msra.mxu0 0
    %1083 = vmatprep.subr.bf16.mxu0 0
    %1084 = vmatpush1.bf16.msra.mxu0 0
    %1085 = vmatprep.subr.bf16.mxu0 0
    %1086 = vmatpush1.bf16.msra.mxu0 0
    %1087 = vmatprep.subr.bf16.mxu0 0
    %1088 = vmatpush1.bf16.msra.mxu0 0
    %1089 = vmatprep.subr.bf16.mxu0 0
    %1090 = vmatpush1.bf16.msra.mxu0 0
    %1091 = vmatprep.subr.bf16.mxu0 0
    %1092 = vmatpush1.bf16.msra.mxu0 0
    %1093 = vmatprep.subr.bf16.mxu0 0
    %1094 = vmatpush1.bf16.msra.mxu0 0
    %1095 = vmatprep.subr.bf16.mxu0 0
    %1096 = vmatpush1.bf16.msra.mxu0 0
    %1097 = vmatprep.subr.bf16.mxu0 0
    %1098 = vmatpush1.bf16.msra.mxu0 0
    %1099 = vmatprep.subr.bf16.mxu0 0
    %1100 = vmatpush1.bf16.msra.mxu0 0
    %1101 = vmatprep.subr.bf16.mxu0 0
    %1102 = vmatpush1.bf16.msra.mxu0 0
    %1103 = vmatprep.mubr.bf16.mxu0 0
    %1104 = vmatmul.mubr.bf16.gmra.mrb[0].mxu0 %v1069
    %v1105 = vpop.f32.mrb[0].mxu0
    %v1106 = vadd.f32 0.0, %v1105
    %v1107 = vpop.f32.mrb[0].mxu0
    %v1108 = vpop.f32.mrb[0].mxu0
    %v1109 = vpop.f32.mrb[0].mxu0
    %1110 = vdwg.mxu0
    %v1112 = vrot.slane %v1106, 5
    %v1113 = vrot.slane %v1106, 6
    %v1116 = vadd.f32 %v647, %v1112
    %v1117 = vadd.f32 %v648, %v1113
    %v1118 = vxor.u32 %v1116, 2147483648
    %v1119 = vxor.u32 %v1117, 2147483648
    %v1120 = vmul.f32 %v1118, 1.442695
    %v1121 = vpow.pop %v1120
    %v1122 = vmul.f32 %v1119, 1.442695
    %v1123 = vpow.pop %v1122
    %v1124 = vadd.f32 %v1121, 1.0
    %v1125 = vadd.f32 %v1123, 1.0
    %v1126 = vrcp.pop %v1124
    %v1127 = vmul.f32 1.0, %v1126
    %v1128 = vrcp.pop %v1125
    %v1129 = vmul.f32 1.0, %v1128
    %v1130 = vtanh.pop %v1116
    %v1131 = vtanh.pop %v1117
    %v1134 = vrot.slane %v1022, 7
    %v1135 = vrot.slane %v1023, 7
    %v1138 = vmul.f32 %v1127, %v1134
    %v1139 = vmul.f32 %v1129, %v1135
    %1142 = vrot.lane.b32.xlu0 %v1130, 32
    %v1143 = vpop.permute.xlu0 %1142
    %1144 = vrot.lane.b32.xlu0 %v1131, 32
    %v1145 = vpop.permute.xlu0 %1144
    %v1148 = vmul.f32 %v1127, %v1143
    %v1149 = vmul.f32 %v1129, %v1145
    %1152 = vrot.lane.b32.xlu0 %v1148, 32
    %v1153 = vpop.permute.xlu0 %1152
    %1154 = vrot.lane.b32.xlu0 %v1149, 32
    %v1155 = vpop.permute.xlu0 %1154
    %v1158 = vadd.f32 %v1138, %v1153
    %v1159 = vadd.f32 %v1139, %v1155
    %v1160 = vtanh.pop %v1158
    %v1161 = vtanh.pop %v1159
    %1164 = vrot.lane.b32.xlu0 %v1160, 32
    %v1165 = vpop.permute.xlu0 %1164
    %1166 = vrot.lane.b32.xlu0 %v1161, 32
    %v1167 = vpop.permute.xlu0 %1166
    %v1170 = vmul.f32 %v1127, %v1165
    %v1171 = vmul.f32 %v1129, %v1167
    %v1172 = vmul.f32 %v1170, %v769
    %v1173 = vmul.f32 %v1171, %v769
    %v1176 = vrot.slane %v1173, 7
    %vm1177 = vcmask 1044484
    %v1178 = vsel %vm1177, %v1176, %v1172
    %1179 = vrot.lane.b32.xlu0 %v1178, 64
    %v1180 = vpop.permute.xlu0 %1179
    %vm1182 = vcmask 258051
    %v1183 = vsel %vm1182, %v1180, 0.0
    %1184 = vadd.xlane.f32.xlu0 %v1183
    %v1185 = vpop.xlane.xlu0 %1184
    %vm1186 = vcmp.eq.s32.totalorder %v177, 3
    %v1187 = vsel %vm1186, %v1185, 0.0
    %v1189 = vrot.slane %v1187, 3
    %v1191 = vadd.f32 %v1055, %v1189
    %v1192 = vpack.c.bf16 %v1170, %v1170
    %v1193 = vpack.c.bf16 %v1171, %v1171
    %v1196 = vunpack.c.l.b16 %v1192
    %v1197 = vunpack.c.l.b16 %v1193
    %v1198 = vrot.slane %v1196, 3
    %v1199 = vrot.slane %v1197, 2
    %v1200 = vsel %vm186, %v1199, %v1198
    %v1201 = vpack.c.b16 %v1200, %v1200
    %1202 = vrot.lane.b32.xlu0 %v1201, 64
    %v1203 = vpop.permute.xlu0 %1202
    %v1205 = vsel %vm161, %v1203, 0
    %1207 = vmatprep.subr.bf16.mxu0 0
    %1208 = vmatpush1.bf16.msra.mxu0 %v662
    %1209 = vmatprep.subr.bf16.mxu0 0
    %1210 = vmatpush1.bf16.msra.mxu0 %v663
    %1211 = vmatprep.subr.bf16.mxu0 0
    %1212 = vmatpush1.bf16.msra.mxu0 0
    %1213 = vmatprep.subr.bf16.mxu0 0
    %1214 = vmatpush1.bf16.msra.mxu0 0
    %1215 = vmatprep.subr.bf16.mxu0 0
    %1216 = vmatpush1.bf16.msra.mxu0 0
    %1217 = vmatprep.subr.bf16.mxu0 0
    %1218 = vmatpush1.bf16.msra.mxu0 0
    %1219 = vmatprep.subr.bf16.mxu0 0
    %1220 = vmatpush1.bf16.msra.mxu0 0
    %1221 = vmatprep.subr.bf16.mxu0 0
    %1222 = vmatpush1.bf16.msra.mxu0 0
    %1223 = vmatprep.subr.bf16.mxu0 0
    %1224 = vmatpush1.bf16.msra.mxu0 0
    %1225 = vmatprep.subr.bf16.mxu0 0
    %1226 = vmatpush1.bf16.msra.mxu0 0
    %1227 = vmatprep.subr.bf16.mxu0 0
    %1228 = vmatpush1.bf16.msra.mxu0 0
    %1229 = vmatprep.subr.bf16.mxu0 0
    %1230 = vmatpush1.bf16.msra.mxu0 0
    %1231 = vmatprep.subr.bf16.mxu0 0
    %1232 = vmatpush1.bf16.msra.mxu0 0
    %1233 = vmatprep.subr.bf16.mxu0 0
    %1234 = vmatpush1.bf16.msra.mxu0 0
    %1235 = vmatprep.subr.bf16.mxu0 0
    %1236 = vmatpush1.bf16.msra.mxu0 0
    %1237 = vmatprep.subr.bf16.mxu0 0
    %1238 = vmatpush1.bf16.msra.mxu0 0
    %1239 = vmatprep.mubr.bf16.mxu0 0
    %1240 = vmatmul.mubr.bf16.gmra.mrb[0].mxu0 %v1205
    %v1241 = vpop.f32.mrb[0].mxu0
    %v1242 = vadd.f32 0.0, %v1241
    %v1243 = vpop.f32.mrb[0].mxu0
    %v1244 = vpop.f32.mrb[0].mxu0
    %v1245 = vpop.f32.mrb[0].mxu0
    %1246 = vdwg.mxu0
    %v1248 = vrot.slane %v1242, 4
    %v1249 = vrot.slane %v1242, 5
    %v1252 = vadd.f32 %v647, %v1248
    %v1253 = vadd.f32 %v648, %v1249
    %v1254 = vxor.u32 %v1252, 2147483648
    %v1255 = vxor.u32 %v1253, 2147483648
    %v1256 = vmul.f32 %v1254, 1.442695
    %v1257 = vpow.pop %v1256
    %v1258 = vmul.f32 %v1255, 1.442695
    %v1259 = vpow.pop %v1258
    %v1260 = vadd.f32 %v1257, 1.0
    %v1261 = vadd.f32 %v1259, 1.0
    %v1262 = vrcp.pop %v1260
    %v1263 = vmul.f32 1.0, %v1262
    %v1264 = vrcp.pop %v1261
    %v1265 = vmul.f32 1.0, %v1264
    %v1266 = vtanh.pop %v1252
    %v1267 = vtanh.pop %v1253
    %v1270 = vrot.slane %v1158, 7
    %v1271 = vrot.slane %v1159, 7
    %v1274 = vmul.f32 %v1263, %v1270
    %v1275 = vmul.f32 %v1265, %v1271
    %1278 = vrot.lane.b32.xlu0 %v1266, 32
    %v1279 = vpop.permute.xlu0 %1278
    %1280 = vrot.lane.b32.xlu0 %v1267, 32
    %v1281 = vpop.permute.xlu0 %1280
    %v1284 = vmul.f32 %v1263, %v1279
    %v1285 = vmul.f32 %v1265, %v1281
    %1288 = vrot.lane.b32.xlu0 %v1284, 32
    %v1289 = vpop.permute.xlu0 %1288
    %1290 = vrot.lane.b32.xlu0 %v1285, 32
    %v1291 = vpop.permute.xlu0 %1290
    %v1294 = vadd.f32 %v1274, %v1289
    %v1295 = vadd.f32 %v1275, %v1291
    %v1296 = vtanh.pop %v1294
    %v1297 = vtanh.pop %v1295
    %1300 = vrot.lane.b32.xlu0 %v1296, 32
    %v1301 = vpop.permute.xlu0 %1300
    %1302 = vrot.lane.b32.xlu0 %v1297, 32
    %v1303 = vpop.permute.xlu0 %1302
    %v1306 = vmul.f32 %v1263, %v1301
    %v1307 = vmul.f32 %v1265, %v1303
    %v1308 = vmul.f32 %v1306, %v769
    %v1309 = vmul.f32 %v1307, %v769
    %v1312 = vrot.slane %v1309, 7
    %vm1313 = vcmask 1045509
    %v1314 = vsel %vm1313, %v1312, %v1308
    %1315 = vrot.lane.b32.xlu0 %v1314, 64
    %v1316 = vpop.permute.xlu0 %1315
    %vm1318 = vcmask 259076
    %v1319 = vsel %vm1318, %v1316, 0.0
    %1320 = vadd.xlane.f32.xlu0 %v1319
    %v1321 = vpop.xlane.xlu0 %1320
    %vm1322 = vcmp.eq.s32.totalorder %v177, 4
    %v1323 = vsel %vm1322, %v1321, 0.0
    %v1325 = vrot.slane %v1323, 4
    %v1327 = vadd.f32 %v1191, %v1325
    %v1328 = vpack.c.bf16 %v1306, %v1306
    %v1329 = vpack.c.bf16 %v1307, %v1307
    %v1332 = vunpack.c.l.b16 %v1328
    %v1333 = vunpack.c.l.b16 %v1329
    %v1334 = vrot.slane %v1332, 4
    %v1335 = vrot.slane %v1333, 3
    %v1336 = vsel %vm186, %v1335, %v1334
    %v1337 = vpack.c.b16 %v1336, %v1336
    %1338 = vrot.lane.b32.xlu0 %v1337, 64
    %v1339 = vpop.permute.xlu0 %1338
    %v1341 = vsel %vm161, %v1339, 0
    %1343 = vmatprep.subr.bf16.mxu0 0
    %1344 = vmatpush1.bf16.msra.mxu0 %v662
    %1345 = vmatprep.subr.bf16.mxu0 0
    %1346 = vmatpush1.bf16.msra.mxu0 %v663
    %1347 = vmatprep.subr.bf16.mxu0 0
    %1348 = vmatpush1.bf16.msra.mxu0 0
    %1349 = vmatprep.subr.bf16.mxu0 0
    %1350 = vmatpush1.bf16.msra.mxu0 0
    %1351 = vmatprep.subr.bf16.mxu0 0
    %1352 = vmatpush1.bf16.msra.mxu0 0
    %1353 = vmatprep.subr.bf16.mxu0 0
    %1354 = vmatpush1.bf16.msra.mxu0 0
    %1355 = vmatprep.subr.bf16.mxu0 0
    %1356 = vmatpush1.bf16.msra.mxu0 0
    %1357 = vmatprep.subr.bf16.mxu0 0
    %1358 = vmatpush1.bf16.msra.mxu0 0
    %1359 = vmatprep.subr.bf16.mxu0 0
    %1360 = vmatpush1.bf16.msra.mxu0 0
    %1361 = vmatprep.subr.bf16.mxu0 0
    %1362 = vmatpush1.bf16.msra.mxu0 0
    %1363 = vmatprep.subr.bf16.mxu0 0
    %1364 = vmatpush1.bf16.msra.mxu0 0
    %1365 = vmatprep.subr.bf16.mxu0 0
    %1366 = vmatpush1.bf16.msra.mxu0 0
    %1367 = vmatprep.subr.bf16.mxu0 0
    %1368 = vmatpush1.bf16.msra.mxu0 0
    %1369 = vmatprep.subr.bf16.mxu0 0
    %1370 = vmatpush1.bf16.msra.mxu0 0
    %1371 = vmatprep.subr.bf16.mxu0 0
    %1372 = vmatpush1.bf16.msra.mxu0 0
    %1373 = vmatprep.subr.bf16.mxu0 0
    %1374 = vmatpush1.bf16.msra.mxu0 0
    %1375 = vmatprep.mubr.bf16.mxu0 0
    %1376 = vmatmul.mubr.bf16.gmra.mrb[0].mxu0 %v1341
    %v1377 = vpop.f32.mrb[0].mxu0
    %v1378 = vadd.f32 0.0, %v1377
    %v1379 = vpop.f32.mrb[0].mxu0
    %v1380 = vpop.f32.mrb[0].mxu0
    %v1381 = vpop.f32.mrb[0].mxu0
    %1382 = vdwg.mxu0
    %v1384 = vrot.slane %v1378, 3
    %v1385 = vrot.slane %v1378, 4
    %v1388 = vadd.f32 %v647, %v1384
    %v1389 = vadd.f32 %v648, %v1385
    %v1390 = vxor.u32 %v1388, 2147483648
    %v1391 = vxor.u32 %v1389, 2147483648
    %v1392 = vmul.f32 %v1390, 1.442695
    %v1393 = vpow.pop %v1392
    %v1394 = vmul.f32 %v1391, 1.442695
    %v1395 = vpow.pop %v1394
    %v1396 = vadd.f32 %v1393, 1.0
    %v1397 = vadd.f32 %v1395, 1.0
    %v1398 = vrcp.pop %v1396
    %v1399 = vmul.f32 1.0, %v1398
    %v1400 = vrcp.pop %v1397
    %v1401 = vmul.f32 1.0, %v1400
    %v1402 = vtanh.pop %v1388
    %v1403 = vtanh.pop %v1389
    %v1406 = vrot.slane %v1294, 7
    %v1407 = vrot.slane %v1295, 7
    %v1410 = vmul.f32 %v1399, %v1406
    %v1411 = vmul.f32 %v1401, %v1407
    %1414 = vrot.lane.b32.xlu0 %v1402, 32
    %v1415 = vpop.permute.xlu0 %1414
    %1416 = vrot.lane.b32.xlu0 %v1403, 32
    %v1417 = vpop.permute.xlu0 %1416
    %v1420 = vmul.f32 %v1399, %v1415
    %v1421 = vmul.f32 %v1401, %v1417
    %1424 = vrot.lane.b32.xlu0 %v1420, 32
    %v1425 = vpop.permute.xlu0 %1424
    %1426 = vrot.lane.b32.xlu0 %v1421, 32
    %v1427 = vpop.permute.xlu0 %1426
    %v1430 = vadd.f32 %v1410, %v1425
    %v1431 = vadd.f32 %v1411, %v1427
    %v1432 = vtanh.pop %v1430
    %v1433 = vtanh.pop %v1431
    %1436 = vrot.lane.b32.xlu0 %v1432, 32
    %v1437 = vpop.permute.xlu0 %1436
    %1438 = vrot.lane.b32.xlu0 %v1433, 32
    %v1439 = vpop.permute.xlu0 %1438
    %v1442 = vmul.f32 %v1399, %v1437
    %v1443 = vmul.f32 %v1401, %v1439
    %v1444 = vmul.f32 %v1442, %v769
    %v1445 = vmul.f32 %v1443, %v769
    %v1448 = vrot.slane %v1445, 7
    %vm1449 = vcmask 1046534
    %v1450 = vsel %vm1449, %v1448, %v1444
    %1451 = vrot.lane.b32.xlu0 %v1450, 64
    %v1452 = vpop.permute.xlu0 %1451
    %vm1454 = vcmask 260101
    %v1455 = vsel %vm1454, %v1452, 0.0
    %1456 = vadd.xlane.f32.xlu0 %v1455
    %v1457 = vpop.xlane.xlu0 %1456
    %vm1458 = vcmp.eq.s32.totalorder %v177, 5
    %v1459 = vsel %vm1458, %v1457, 0.0
    %v1461 = vrot.slane %v1459, 5
    %v1463 = vadd.f32 %v1327, %v1461
    %v1464 = vpack.c.bf16 %v1442, %v1442
    %v1465 = vpack.c.bf16 %v1443, %v1443
    %v1468 = vunpack.c.l.b16 %v1464
    %v1469 = vunpack.c.l.b16 %v1465
    %v1470 = vrot.slane %v1468, 5
    %v1471 = vrot.slane %v1469, 4
    %v1472 = vsel %vm186, %v1471, %v1470
    %v1473 = vpack.c.b16 %v1472, %v1472
    %1474 = vrot.lane.b32.xlu0 %v1473, 64
    %v1475 = vpop.permute.xlu0 %1474
    %v1477 = vsel %vm161, %v1475, 0
    %1479 = vmatprep.subr.bf16.mxu0 0
    %1480 = vmatpush1.bf16.msra.mxu0 %v662
    %1481 = vmatprep.subr.bf16.mxu0 0
    %1482 = vmatpush1.bf16.msra.mxu0 %v663
    %1483 = vmatprep.subr.bf16.mxu0 0
    %1484 = vmatpush1.bf16.msra.mxu0 0
    %1485 = vmatprep.subr.bf16.mxu0 0
    %1486 = vmatpush1.bf16.msra.mxu0 0
    %1487 = vmatprep.subr.bf16.mxu0 0
    %1488 = vmatpush1.bf16.msra.mxu0 0
    %1489 = vmatprep.subr.bf16.mxu0 0
    %1490 = vmatpush1.bf16.msra.mxu0 0
    %1491 = vmatprep.subr.bf16.mxu0 0
    %1492 = vmatpush1.bf16.msra.mxu0 0
    %1493 = vmatprep.subr.bf16.mxu0 0
    %1494 = vmatpush1.bf16.msra.mxu0 0
    %1495 = vmatprep.subr.bf16.mxu0 0
    %1496 = vmatpush1.bf16.msra.mxu0 0
    %1497 = vmatprep.subr.bf16.mxu0 0
    %1498 = vmatpush1.bf16.msra.mxu0 0
    %1499 = vmatprep.subr.bf16.mxu0 0
    %1500 = vmatpush1.bf16.msra.mxu0 0
    %1501 = vmatprep.subr.bf16.mxu0 0
    %1502 = vmatpush1.bf16.msra.mxu0 0
    %1503 = vmatprep.subr.bf16.mxu0 0
    %1504 = vmatpush1.bf16.msra.mxu0 0
    %1505 = vmatprep.subr.bf16.mxu0 0
    %1506 = vmatpush1.bf16.msra.mxu0 0
    %1507 = vmatprep.subr.bf16.mxu0 0
    %1508 = vmatpush1.bf16.msra.mxu0 0
    %1509 = vmatprep.subr.bf16.mxu0 0
    %1510 = vmatpush1.bf16.msra.mxu0 0
    %1511 = vmatprep.mubr.bf16.mxu0 0
    %1512 = vmatmul.mubr.bf16.gmra.mrb[0].mxu0 %v1477
    %v1513 = vpop.f32.mrb[0].mxu0
    %v1514 = vadd.f32 0.0, %v1513
    %v1515 = vpop.f32.mrb[0].mxu0
    %v1516 = vpop.f32.mrb[0].mxu0
    %v1517 = vpop.f32.mrb[0].mxu0
    %1518 = vdwg.mxu0
    %v1520 = vrot.slane %v1514, 2
    %v1521 = vrot.slane %v1514, 3
    %v1524 = vadd.f32 %v647, %v1520
    %v1525 = vadd.f32 %v648, %v1521
    %v1526 = vxor.u32 %v1524, 2147483648
    %v1527 = vxor.u32 %v1525, 2147483648
    %v1528 = vmul.f32 %v1526, 1.442695
    %v1529 = vpow.pop %v1528
    %v1530 = vmul.f32 %v1527, 1.442695
    %v1531 = vpow.pop %v1530
    %v1532 = vadd.f32 %v1529, 1.0
    %v1533 = vadd.f32 %v1531, 1.0
    %v1534 = vrcp.pop %v1532
    %v1535 = vmul.f32 1.0, %v1534
    %v1536 = vrcp.pop %v1533
    %v1537 = vmul.f32 1.0, %v1536
    %v1538 = vtanh.pop %v1524
    %v1539 = vtanh.pop %v1525
    %v1542 = vrot.slane %v1430, 7
    %v1543 = vrot.slane %v1431, 7
    %v1546 = vmul.f32 %v1535, %v1542
    %v1547 = vmul.f32 %v1537, %v1543
    %1550 = vrot.lane.b32.xlu0 %v1538, 32
    %v1551 = vpop.permute.xlu0 %1550
    %1552 = vrot.lane.b32.xlu0 %v1539, 32
    %v1553 = vpop.permute.xlu0 %1552
    %v1556 = vmul.f32 %v1535, %v1551
    %v1557 = vmul.f32 %v1537, %v1553
    %1560 = vrot.lane.b32.xlu0 %v1556, 32
    %v1561 = vpop.permute.xlu0 %1560
    %1562 = vrot.lane.b32.xlu0 %v1557, 32
    %v1563 = vpop.permute.xlu0 %1562
    %v1566 = vadd.f32 %v1546, %v1561
    %v1567 = vadd.f32 %v1547, %v1563
    %v1568 = vtanh.pop %v1566
    %v1569 = vtanh.pop %v1567
    %1572 = vrot.lane.b32.xlu0 %v1568, 32
    %v1573 = vpop.permute.xlu0 %1572
    %1574 = vrot.lane.b32.xlu0 %v1569, 32
    %v1575 = vpop.permute.xlu0 %1574
    %v1578 = vmul.f32 %v1535, %v1573
    %v1579 = vmul.f32 %v1537, %v1575
    %v1580 = vmul.f32 %v1578, %v769
    %v1581 = vmul.f32 %v1579, %v769
    %v1584 = vrot.slane %v1581, 7
    %vm1585 = vcmask 1047559
    %v1586 = vsel %vm1585, %v1584, %v1580
    %1587 = vrot.lane.b32.xlu0 %v1586, 64
    %v1588 = vpop.permute.xlu0 %1587
    %vm1590 = vcmask 261126
    %v1591 = vsel %vm1590, %v1588, 0.0
    %1592 = vadd.xlane.f32.xlu0 %v1591
    %v1593 = vpop.xlane.xlu0 %1592
    %vm1594 = vcmp.eq.s32.totalorder %v177, 6
    %v1595 = vsel %vm1594, %v1593, 0.0
    %v1597 = vrot.slane %v1595, 6
    %v1599 = vadd.f32 %v1463, %v1597
    %v1600 = vpack.c.bf16 %v1578, %v1578
    %v1601 = vpack.c.bf16 %v1579, %v1579
    %v1604 = vunpack.c.l.b16 %v1600
    %v1605 = vunpack.c.l.b16 %v1601
    %v1606 = vrot.slane %v1604, 6
    %v1607 = vrot.slane %v1605, 5
    %v1608 = vsel %vm186, %v1607, %v1606
    %v1609 = vpack.c.b16 %v1608, %v1608
    %1610 = vrot.lane.b32.xlu0 %v1609, 64
    %v1611 = vpop.permute.xlu0 %1610
    %v1613 = vsel %vm161, %v1611, 0
    %1615 = vmatprep.subr.bf16.mxu0 0
    %1616 = vmatpush1.bf16.msra.mxu0 %v662
    %1617 = vmatprep.subr.bf16.mxu0 0
    %1618 = vmatpush1.bf16.msra.mxu0 %v663
    %1619 = vmatprep.subr.bf16.mxu0 0
    %1620 = vmatpush1.bf16.msra.mxu0 0
    %1621 = vmatprep.subr.bf16.mxu0 0
    %1622 = vmatpush1.bf16.msra.mxu0 0
    %1623 = vmatprep.subr.bf16.mxu0 0
    %1624 = vmatpush1.bf16.msra.mxu0 0
    %1625 = vmatprep.subr.bf16.mxu0 0
    %1626 = vmatpush1.bf16.msra.mxu0 0
    %1627 = vmatprep.subr.bf16.mxu0 0
    %1628 = vmatpush1.bf16.msra.mxu0 0
    %1629 = vmatprep.subr.bf16.mxu0 0
    %1630 = vmatpush1.bf16.msra.mxu0 0
    %1631 = vmatprep.subr.bf16.mxu0 0
    %1632 = vmatpush1.bf16.msra.mxu0 0
    %1633 = vmatprep.subr.bf16.mxu0 0
    %1634 = vmatpush1.bf16.msra.mxu0 0
    %1635 = vmatprep.subr.bf16.mxu0 0
    %1636 = vmatpush1.bf16.msra.mxu0 0
    %1637 = vmatprep.subr.bf16.mxu0 0
    %1638 = vmatpush1.bf16.msra.mxu0 0
    %1639 = vmatprep.subr.bf16.mxu0 0
    %1640 = vmatpush1.bf16.msra.mxu0 0
    %1641 = vmatprep.subr.bf16.mxu0 0
    %1642 = vmatpush1.bf16.msra.mxu0 0
    %1643 = vmatprep.subr.bf16.mxu0 0
    %1644 = vmatpush1.bf16.msra.mxu0 0
    %1645 = vmatprep.subr.bf16.mxu0 0
    %1646 = vmatpush1.bf16.msra.mxu0 0
    %1647 = vmatprep.mubr.bf16.mxu0 0
    %1648 = vmatmul.mubr.bf16.gmra.mrb[0].mxu0 %v1613
    %v1649 = vpop.f32.mrb[0].mxu0
    %v1650 = vadd.f32 0.0, %v1649
    %v1651 = vpop.f32.mrb[0].mxu0
    %v1652 = vpop.f32.mrb[0].mxu0
    %v1653 = vpop.f32.mrb[0].mxu0
    %1654 = vdwg.mxu0
    %v1656 = vrot.slane %v1650, 1
    %v1657 = vrot.slane %v1650, 2
    %v1660 = vadd.f32 %v647, %v1656
    %v1661 = vadd.f32 %v648, %v1657
    %v1662 = vxor.u32 %v1660, 2147483648
    %v1663 = vxor.u32 %v1661, 2147483648
    %v1664 = vmul.f32 %v1662, 1.442695
    %v1665 = vpow.pop %v1664
    %v1666 = vmul.f32 %v1663, 1.442695
    %v1667 = vpow.pop %v1666
    %v1668 = vadd.f32 %v1665, 1.0
    %v1669 = vadd.f32 %v1667, 1.0
    %v1670 = vrcp.pop %v1668
    %v1671 = vmul.f32 1.0, %v1670
    %v1672 = vrcp.pop %v1669
    %v1673 = vmul.f32 1.0, %v1672
    %v1674 = vtanh.pop %v1660
    %v1675 = vtanh.pop %v1661
    %v1678 = vrot.slane %v1566, 7
    %v1679 = vrot.slane %v1567, 7
    %v1682 = vmul.f32 %v1671, %v1678
    %v1683 = vmul.f32 %v1673, %v1679
    %1686 = vrot.lane.b32.xlu0 %v1674, 32
    %v1687 = vpop.permute.xlu0 %1686
    %1688 = vrot.lane.b32.xlu0 %v1675, 32
    %v1689 = vpop.permute.xlu0 %1688
    %v1692 = vmul.f32 %v1671, %v1687
    %v1693 = vmul.f32 %v1673, %v1689
    %1696 = vrot.lane.b32.xlu0 %v1692, 32
    %v1697 = vpop.permute.xlu0 %1696
    %1698 = vrot.lane.b32.xlu0 %v1693, 32
    %v1699 = vpop.permute.xlu0 %1698
    %v1702 = vadd.f32 %v1682, %v1697
    %v1703 = vadd.f32 %v1683, %v1699
    %v1704 = vtanh.pop %v1702
    %v1705 = vtanh.pop %v1703
    %1708 = vrot.lane.b32.xlu0 %v1704, 32
    %v1709 = vpop.permute.xlu0 %1708
    %1710 = vrot.lane.b32.xlu0 %v1705, 32
    %v1711 = vpop.permute.xlu0 %1710
    %v1714 = vmul.f32 %v1671, %v1709
    %v1715 = vmul.f32 %v1673, %v1711
    %v1716 = vmul.f32 %v1714, %v769
    %v1717 = vmul.f32 %v1715, %v769
    %v1720 = vrot.slane %v1717, 7
    %1721 = vrot.lane.b32.xlu0 %v1716, 64
    %v1722 = vpop.permute.xlu0 %1721
    %1723 = vrot.lane.b32.xlu0 %v1720, 64
    %v1724 = vpop.permute.xlu0 %1723
    %vm1727 = vcmask 261127
    %v1728 = vsel %vm1727, %v1722, 0.0
    %1729 = vadd.xlane.f32.xlu0 %v1728
    %v1730 = vpop.xlane.xlu0 %1729
    %vm1731 = vcmask 253952
    %v1732 = vsel %vm1731, %v1724, 0.0
    %1733 = vadd.xlane.f32.xlu0 %v1732
    %v1734 = vpop.xlane.xlu0 %1733
    %vm1735 = vcmp.eq.s32.totalorder %v177, 7
    %v1736 = vsel %vm1735, %v1730, 0.0
    %v1737 = vsel %vm1735, %v1734, 0.0
    %vm1740 = vcmask 1040384
    %v1741 = vrot.slane %v1736, 7
    %v1742 = vrot.slane %v1737, 7
    %v1743 = vsel %vm1740, %v1741, %v1742
    %v1745 = vadd.f32 %v1599, %v1743
    %v1747 = vlaneseq
    %v1748 = vshrl.u32 %v1747, 7
    %v1749 = vsub.s32 0, %v1748
    %v1750 = vrot.slane %v1745, %v1749
    %1752 = vbcast.lane.b32.xlu0 %v1750, 256
    %v1753 = vpop.permute.xlu0 %1752
    %v1754 = vlaneseq
    %v1755 = vshrl.u32 %v1754, 7
    %v1756 = vsub.s32 1, %v1755
    %v1757 = vrot.slane %v1745, %v1756
    %1759 = vbcast.lane.b32.xlu0 %v1757, 256
    %v1760 = vpop.permute.xlu0 %1759
    %v1763 = vadd.f32 %v149, %v1753
    %v1764 = vadd.f32 %v151, %v1760
    %s1765 = sld [smem:[#allocation3]]
    %v1766 = vstv %s1765
    %v1767 = vadd.f32 %v1763, %v1766
    %v1768 = vadd.f32 %v1764, %v1766
    %1771 = vset.pattern.permute.xlu0 0
    %1772 = vperm.xlu0 %1771, %v1767
    %v1773 = vpop.permute.xlu0 %1772
    %1774 = vset.pattern.permute.xlu0 0
    %1775 = vperm.xlu0 %1774, %v1768
    %v1776 = vpop.permute.xlu0 %1775
    %v1777 = vlaneseq
    %v1778 = vshrl.u32 %v1777, 7
    %v1779 = vsub.s32 %v177, %v1778
    %v1780 = vrot.slane %v1773, %v1779
    %v1781 = vlaneseq
    %v1782 = vshrl.u32 %v1781, 7
    %v1783 = vsub.s32 %v177, %v1782
    %v1784 = vrot.slane %v1776, %v1783
    %v1785 = vsel %vm186, %v1784, %v1780
    %v1787 = vsel %vm189, %v1785, -inf
    %1788 = vmax.xlane.f32.xlu0 %v1787
    %v1789 = vpop.xlane.xlu0 %1788
    %v1791 = vlaneseq
    %v1792 = vshrl.u32 %v1791, 7
    %v1793 = vsub.s32 0, %v1792
    %v1794 = vrot.slane %v1789, %v1793
    %v1795 = vlaneseq
    %v1796 = vshrl.u32 %v1795, 7
    %v1797 = vsub.s32 1, %v1796
    %v1798 = vrot.slane %v1789, %v1797
    %v1801 = vsub.f32 %v1767, %v1794
    %v1802 = vsub.f32 %v1768, %v1798
    %v1803 = vmul.f32 %v1801, 1.442695
    %v1804 = vpow.pop %v1803
    %v1805 = vmul.f32 %v1802, 1.442695
    %v1806 = vpow.pop %v1805
    %1809 = vset.pattern.permute.xlu0 0
    %1810 = vperm.xlu0 %1809, %v1804
    %v1811 = vpop.permute.xlu0 %1810
    %1812 = vset.pattern.permute.xlu0 0
    %1813 = vperm.xlu0 %1812, %v1806
    %v1814 = vpop.permute.xlu0 %1813
    %v1815 = vlaneseq
    %v1816 = vshrl.u32 %v1815, 7
    %v1817 = vsub.s32 %v177, %v1816
    %v1818 = vrot.slane %v1811, %v1817
    %v1819 = vlaneseq
    %v1820 = vshrl.u32 %v1819, 7
    %v1821 = vsub.s32 %v177, %v1820
    %v1822 = vrot.slane %v1814, %v1821
    %v1823 = vsel %vm186, %v1822, %v1818
    %v1825 = vsel %vm189, %v1823, 0.0
    %1826 = vadd.xlane.f32.xlu0 %v1825
    %v1827 = vpop.xlane.xlu0 %1826
    %v1828 = vlog2.pop %v1827
    %v1829 = vmul.f32 %v1828, 0.6931472
    %v1831 = vlaneseq
    %v1832 = vshrl.u32 %v1831, 7
    %v1833 = vsub.s32 0, %v1832
    %v1834 = vrot.slane %v1829, %v1833
    %v1835 = vlaneseq
    %v1836 = vshrl.u32 %v1835, 7
    %v1837 = vsub.s32 1, %v1836
    %v1838 = vrot.slane %v1829, %v1837
    %v1841 = vsub.f32 %v1801, %v1834
    %v1842 = vsub.f32 %v1802, %v1838
    %1845 = vset.pattern.permute.xlu0 0
    %1846 = vperm.xlu0 %1845, %v1841
    %v1847 = vpop.permute.xlu0 %1846
    %1848 = vset.pattern.permute.xlu0 0
    %1849 = vperm.xlu0 %1848, %v1842
    %v1850 = vpop.permute.xlu0 %1849
    %v1851 = vlaneseq
    %v1852 = vshrl.u32 %v1851, 7
    %v1853 = vsub.s32 %v177, %v1852
    %v1854 = vrot.slane %v1847, %v1853
    %v1855 = vlaneseq
    %v1856 = vshrl.u32 %v1855, 7
    %v1857 = vsub.s32 %v177, %v1856
    %v1858 = vrot.slane %v1850, %v1857
    %1861 = vst.msk [vmem:[#allocation14] sm:$0x1] %vm264, %v1854
    %1862 = vst.msk [vmem:[#allocation14 + $0x1] sm:$0x1] %vm264, %v1858
    // Predicated region
    $region78: #{tpu_custom_call.1} parent=1 // pred_check
      _
    $region79: #{tpu_custom_call.1} parent=1 // pred_check_branch
      %1864 = sbr.rel (0) target = $region81
    $region80: #{tpu_custom_call.1} parent=1 // pred_region
      %s1866 = ssub.s32 32, 32
      %1867 = vsyncadd [#allocation6], %s1866
      %s1868 = sshll.u32 [#allocation13], 4
      %s1869 = int_to_ptr.vmem [resolvable:$true] %s1868
      %1874 = dma.vmem_to_hbm [thread:$0]  %s1869, 32, %s14, [#allocation6], 16, 16, 1
    $region81: #{tpu_custom_call.1} parent=1 // pred_fallthru
      _
    // Predicated region
    $region82: #{tpu_custom_call.1} parent=1 // pred_check
      _
    $region83: #{tpu_custom_call.1} parent=1 // pred_check_branch
      %1876 = sbr.rel (0) target = $region85
    $region84: #{tpu_custom_call.1} parent=1 // pred_region
      %s1878 = ssub.s32 32, 32
      %1879 = vsyncadd [#allocation15], %s1878
      %s1880 = sshll.u32 [#allocation14], 4
      %s1881 = int_to_ptr.vmem [resolvable:$true] %s1880
      %1886 = dma.vmem_to_hbm [thread:$0]  %s1881, 32, %s15, [#allocation15], 16, 16, 1
    $region85: #{tpu_custom_call.1} parent=1 // pred_fallthru
      _
    // Predicated region
    $region86: #{tpu_custom_call.1} parent=1 // pred_check
      _
    $region87: #{tpu_custom_call.1} parent=1 // pred_check_branch
      %1888 = sbr.rel (0) target = $region89
    $region88: #{tpu_custom_call.1} parent=1 // pred_region
      %1889 = dma.done [#allocation6], 32
    $region89: #{tpu_custom_call.1} parent=1 // pred_fallthru
      _
    // Predicated region
    $region90: #{tpu_custom_call.1} parent=1 // pred_check
      _
    $region91: #{tpu_custom_call.1} parent=1 // pred_check_branch
      %1891 = sbr.rel (0) target = $region93
    $region92: #{tpu_custom_call.1} parent=1 // pred_region
      %1892 = dma.done [#allocation15], 32
    $region93: #{tpu_custom_call.1} parent=1 // pred_fallthru
      _
    %1893 = vsyncpa [#allocation5], 1
    %1894 = vsyncpa [#allocation8], 1
    %1895 = vsyncpa [#allocation11], 1
    %1896 = vsyncpa [#allocation6], 1
    %1897 = vsyncpa [#allocation15], 1

</llo_original>
